<compile_context>
chip_gen: v5e
topology: v5e:2x2
jax: 0.10.0
libtpu: 0.0.40
codegen_flags: <defaults>
</compile_context>

<pallas_src>
import functools

import jax
import jax.numpy as jnp
from jax import lax
from jax.experimental import pallas as pl
from jax.experimental.pallas import tpu as pltpu

_MiB = 1024 * 1024


# ----------------------------- Pallas kernel ------------------------------ #

def _layernorm(x, gamma, beta, eps=1e-5):
    # f32 LayerNorm (PyTorch semantics: biased variance, eps inside sqrt).
    mean = jnp.mean(x, axis=-1, keepdims=True)
    var = jnp.mean((x - mean) ** 2, axis=-1, keepdims=True)
    return (x - mean) * lax.rsqrt(var + eps) * gamma + beta


def decoder_block_kernel(x_ref,
                         ln1_g_ref, ln1_b_ref,
                         wqkv_ref, wp_ref, bp_ref,
                         ln2_g_ref, ln2_b_ref,
                         w1_ref, b1_ref,
                         w2_ref, b2_ref,
                         out_ref,
                         *, n_heads, compute_dtype):
    Bt, T, E = x_ref.shape
    hs = E // n_heads
    cd = compute_dtype

    # Fold the batch tile into rows: (Bt, T, E) -> (Bt*T, E) (leading-dim
    # collapse only; lane dim unchanged), upcast once to f32 for LN/residual.
    x = x_ref[...].reshape(Bt * T, E).astype(jnp.float32)

    # -------------------- x + proj(causal MHSA(ln1(x))) ---------------------
    xn = _layernorm(x, ln1_g_ref[0], ln1_b_ref[0])

    # One fused QKV matmul (cd operands, f32 accumulate).  The C**-0.5 score
    # scale (C = n_embd, per the PyTorch Head) is pre-folded into the Q columns
    # of wqkv in the wrapper, so no extra scaling here.
    qkv = jnp.dot(xn.astype(cd), wqkv_ref[...],
                  preferred_element_type=jnp.float32)            # (Bt*T, 3E) f32

    # Causal mask built once per grid step; large finite negative (not -inf).
    row = lax.broadcasted_iota(jnp.int32, (T, T), 0)
    col = lax.broadcasted_iota(jnp.int32, (T, T), 1)
    causal = (col <= row)[None, :, :]                            # (1, T, T)
    neg = jnp.float32(-1e30)

    # Per-head attention, batched over Bt via single-batch-dim einsums (MXU).
    # Head outputs are folded directly into the output projection, so no
    # lane-sliced scratch stores and no attention scratch slab are needed.
    # TODO(synk): flash-style KV tiling for realistic T (see header).
    sa = jnp.zeros((Bt * T, E), jnp.float32)
    for h in range(n_heads):                                     # static, small
        q = qkv[:, h * hs:(h + 1) * hs].reshape(Bt, T, hs).astype(cd)
        k = qkv[:, E + h * hs:E + (h + 1) * hs].reshape(Bt, T, hs).astype(cd)
        v = qkv[:, 2 * E + h * hs:2 * E + (h + 1) * hs].reshape(Bt, T, hs).astype(cd)

        wei = jnp.einsum("bqd,bkd->bqk", q, k,
                         preferred_element_type=jnp.float32)     # (Bt, T, T)
        wei = jnp.where(causal, wei, neg)
        m = jnp.max(wei, axis=-1, keepdims=True)
        p = jnp.exp(wei - m)
        denom = jnp.sum(p, axis=-1, keepdims=True)
        p = p * pl.reciprocal(denom, approx=True)                # EUP slot

        att = jnp.einsum("bqk,bkd->bqd", p.astype(cd), v,
                         preferred_element_type=jnp.float32)     # (Bt, T, hs)
        # Accumulate the output projection for this head (lane-dense result).
        sa = sa + jnp.dot(att.reshape(Bt * T, hs).astype(cd), wp_ref[h],
                          preferred_element_type=jnp.float32)    # (Bt*T, E)

    x1 = x + sa + bp_ref[0]

    # ------------------------- x1 + MLP(ln2(x1)) ----------------------------
    # TODO(synk): stream w1/w2 K-tiles for large E instead of full residency.
    xn2 = _layernorm(x1, ln2_g_ref[0], ln2_b_ref[0])
    h1 = jnp.dot(xn2.astype(cd), w1_ref[...],
                 preferred_element_type=jnp.float32) + b1_ref[0]
    h1 = jnp.maximum(h1, 0.0)                                    # ReLU (f32)
    ff = jnp.dot(h1.astype(cd), w2_ref[...],
                 preferred_element_type=jnp.float32) + b2_ref[0]

    out_ref[...] = (x1 + ff).reshape(Bt, T, E).astype(out_ref.dtype)


# ------------------------------- wrapper ----------------------------------- #

def _vmem_capacity_bytes():
    """Physical per-core VMEM if queryable; safe default otherwise."""
    try:
        return int(pltpu.get_tpu_info().vmem_capacity_bytes)
    except Exception:
        return 128 * _MiB     # v5e/v6e value; v7x reports 64 MiB via the query


def _estimate_vmem_bytes(block_b, T, E, x_bytes, out_bytes, w_bytes,
                         single_buffer_weights=True):
    rows = block_b * T
    nbuf = 1 if single_buffer_weights else 2
    io = 2 * rows * E * (x_bytes + out_bytes)                    # x/out dbl-buffered
    weights = nbuf * (3 * E * E + E * E + 4 * E * E + 4 * E * E) * w_bytes
    small = nbuf * 16 * E * 4                                    # LN params + biases
    acts = rows * (6 * E + 3 * E + 4 * E) * 4                    # f32 live activations
    scores = 3 * block_b * T * T * 4                             # per-head wei/p slack
    return io + weights + small + acts + scores


def _pick_block_b(B, T, E, budget, x_bytes, out_bytes, w_bytes):
    """Largest divisor of B whose footprint fits the VMEM budget while keeping
    >= 2 grid steps (both v7x TensorCores busy) whenever B allows it."""
    best = 1
    for d in range(1, B + 1):
        if B % d:
            continue
        if B >= 2 and B // d < 2:
            continue
        if _estimate_vmem_bytes(d, T, E, x_bytes, out_bytes, w_bytes) <= budget:
            best = d
    return best


def decoder_block(x, params, *, n_heads, compute_dtype=jnp.bfloat16,
                  block_b=None, out_dtype=None):
    B, T, E = x.shape
    assert E % n_heads == 0
    hs = E // n_heads
    out_dtype = x.dtype if out_dtype is None else out_dtype

    # One-time weight prep: fuse QKV, fold the C**-0.5 score scale into the Q
    # columns, cast matmul weights to the MXU dtype, reshape Wp head-major.
    f32 = jnp.float32
    scale = jnp.asarray(E, f32) ** -0.5        # PyTorch Head: C**-0.5, C=n_embd
    wqkv = jnp.concatenate(
        [params["wq"].astype(f32) * scale,
         params["wk"].astype(f32),
         params["wv"].astype(f32)], axis=1).astype(compute_dtype)    # (E, 3E)
    wp = params["wp"].astype(compute_dtype).reshape(n_heads, hs, E)  # (H, hs, E)
    w1 = params["w1"].astype(compute_dtype)                          # (E, 4E)
    w2 = params["w2"].astype(compute_dtype)                          # (4E, E)

    x_bytes = jnp.dtype(x.dtype).itemsize
    o_bytes = jnp.dtype(out_dtype).itemsize
    w_bytes = jnp.dtype(compute_dtype).itemsize
    budget = int(0.75 * _vmem_capacity_bytes())    # headroom for compiler scratch
    if block_b is None:
        block_b = _pick_block_b(B, T, E, budget, x_bytes, o_bytes, w_bytes)
    assert B % block_b == 0
    need = _estimate_vmem_bytes(block_b, T, E, x_bytes, o_bytes, w_bytes)
    vmem_limit = int(min(budget, max(32 * _MiB, int(1.5 * need))))

    kernel = functools.partial(decoder_block_kernel,
                               n_heads=n_heads, compute_dtype=compute_dtype)

    def run(single_buffer_weights):
        def const_spec(shape):
            idx = lambda b: (0,) * len(shape)
            if single_buffer_weights:
                # Constant block index -> single buffer (halves weight VMEM).
                return pl.BlockSpec(shape, idx, pipeline_mode=pl.Buffered(1))
            return pl.BlockSpec(shape, idx)

        out = pl.pallas_call(
            kernel,
            out_shape=jax.ShapeDtypeStruct((B, T, E), out_dtype),
            grid_spec=pltpu.PrefetchScalarGridSpec(
                num_scalar_prefetch=0,
                grid=(B // block_b,),
                in_specs=[
                    pl.BlockSpec((block_b, T, E), lambda b: (b, 0, 0)),  # x
                    const_spec((1, E)), const_spec((1, E)),        # ln1 gamma, beta
                    const_spec((E, 3 * E)),                        # fused Wqkv
                    const_spec((n_heads, hs, E)),                  # Wp (head-major)
                    const_spec((1, E)),                            # proj bias
                    const_spec((1, E)), const_spec((1, E)),        # ln2 gamma, beta
                    const_spec((E, 4 * E)), const_spec((1, 4 * E)),  # MLP W1, b1
                    const_spec((4 * E, E)), const_spec((1, E)),      # MLP W2, b2
                ],
                out_specs=pl.BlockSpec((block_b, T, E), lambda b: (b, 0, 0)),
            ),
            compiler_params=pltpu.CompilerParams(
                dimension_semantics=("parallel",),
                vmem_limit_bytes=vmem_limit,
            ),
        )(x,
          params["ln1_g"], params["ln1_b"],
          wqkv, wp, params["bp"],
          params["ln2_g"], params["ln2_b"],
          w1, params["b1"],
          w2, params["b2"])
        return jax.block_until_ready(out)

    try:
        return run(single_buffer_weights=True)
    except Exception:
        # Fallback if this runtime rejects pipeline_mode=pl.Buffered(1):
        # default double-buffered constant-index specs (correct, more VMEM).
        return run(single_buffer_weights=False)


# -------------------------- pure-JAX reference ------------------------------ #

def decoder_block_ref(x, params, *, n_heads):
    B, T, E = x.shape
    hs = E // n_heads

    def ln(v, g, b):
        m = jnp.mean(v, -1, keepdims=True)
        s = jnp.mean((v - m) ** 2, -1, keepdims=True)
        return (v - m) / jnp.sqrt(s + 1e-5) * g + b

    xn = ln(x, params["ln1_g"][0], params["ln1_b"][0])
    q = xn @ params["wq"]; k = xn @ params["wk"]; v = xn @ params["wv"]
    q = q.reshape(B, T, n_heads, hs).transpose(0, 2, 1, 3)
    k = k.reshape(B, T, n_heads, hs).transpose(0, 2, 1, 3)
    v = v.reshape(B, T, n_heads, hs).transpose(0, 2, 1, 3)
    wei = jnp.einsum("bhqd,bhkd->bhqk", q, k) * (E ** -0.5)
    mask = jnp.tril(jnp.ones((T, T), bool))
    wei = jnp.where(mask, wei, -jnp.inf)
    wei = jax.nn.softmax(wei, axis=-1)
    out = jnp.einsum("bhqk,bhkd->bhqd", wei, v).transpose(0, 2, 1, 3).reshape(B, T, E)
    x1 = x + (out @ params["wp"] + params["bp"][0])
    xn2 = ln(x1, params["ln2_g"][0], params["ln2_b"][0])
    ff = jnp.maximum(xn2 @ params["w1"] + params["b1"][0], 0.0) @ params["w2"] + params["b2"][0]
    return x1 + ff


# --------------------------------- main ------------------------------------- #

if __name__ == "__main__":
    B, T, E, H = 2, 8, 32, 4      # batch, block_size (seq), n_embd, n_heads
    key = jax.random.PRNGKey(0)
    ks = jax.random.split(key, 10)

    def winit(k, shape, scale=0.05):
        return (scale * jax.random.normal(k, shape)).astype(jnp.float32)

    params = {
        "ln1_g": jnp.ones((1, E), jnp.float32),
        "ln1_b": jnp.zeros((1, E), jnp.float32),
        # per-head (head_size, E) torch weights concatenated & transposed -> (E, E)
        "wq": winit(ks[0], (E, E)),
        "wk": winit(ks[1], (E, E)),
        "wv": winit(ks[2], (E, E)),
        "wp": winit(ks[3], (E, E)),
        "bp": winit(ks[4], (1, E)),
        "ln2_g": jnp.ones((1, E), jnp.float32),
        "ln2_b": jnp.zeros((1, E), jnp.float32),
        "w1": winit(ks[5], (E, 4 * E)),
        "b1": winit(ks[6], (1, 4 * E)),
        "w2": winit(ks[7], (4 * E, E)),
        "b2": winit(ks[8], (1, E)),
    }

    x = jax.random.normal(ks[9], (B, T, E), jnp.float32)

    ref = decoder_block_ref(x, params, n_heads=H)

    # f32 MXU path: tight numerical check against the f32 reference.
    out_f32 = jax.block_until_ready(
        decoder_block(x, params, n_heads=H, compute_dtype=jnp.float32))
    assert out_f32.shape == (B, T, E)
    assert jnp.allclose(out_f32, ref, atol=5e-3, rtol=5e-3), "f32 kernel mismatch"

    # bf16 MXU path (default fast path): looser tolerance vs f32 reference.
    out_bf16 = jax.block_until_ready(decoder_block(x, params, n_heads=H))
    assert out_bf16.shape == (B, T, E)
    assert jnp.allclose(out_bf16, ref, atol=3e-2, rtol=3e-2), "bf16 kernel mismatch"

    print("KERNEL_OK")
</pallas_src>

<mosaic_0001>
module attributes {stable_mosaic.version = 11 : i64} {
  func.func @decoder_block_kernel(%arg0: i32, %arg1: memref<1x8x32xf32, #tpu.memory_space<vmem>>, %arg2: memref<1x32xf32, #tpu.memory_space<vmem>>, %arg3: memref<1x32xf32, #tpu.memory_space<vmem>>, %arg4: memref<32x96xf32, #tpu.memory_space<vmem>>, %arg5: memref<4x8x32xf32, #tpu.memory_space<vmem>>, %arg6: memref<1x32xf32, #tpu.memory_space<vmem>>, %arg7: memref<1x32xf32, #tpu.memory_space<vmem>>, %arg8: memref<1x32xf32, #tpu.memory_space<vmem>>, %arg9: memref<32x128xf32, #tpu.memory_space<vmem>>, %arg10: memref<1x128xf32, #tpu.memory_space<vmem>>, %arg11: memref<128x32xf32, #tpu.memory_space<vmem>>, %arg12: memref<1x32xf32, #tpu.memory_space<vmem>>, %arg13: memref<1x8x32xf32, #tpu.memory_space<vmem>>) attributes {dimension_semantics = [#tpu.dimension_semantics<parallel>], iteration_bounds = array<i64: 2>, scalar_prefetch = 0 : i64, scratch_operands = 0 : i64, tpu.core_type = #tpu.core_type<tc>, window_params = [{transform_indices = @transform_0, window_bounds = array<i64: 1, 8, 32>}, {pipeline_mode = #tpu.pipeline_mode<synchronous>, transform_indices = @transform_1, window_bounds = array<i64: 1, 32>}, {pipeline_mode = #tpu.pipeline_mode<synchronous>, transform_indices = @transform_2, window_bounds = array<i64: 1, 32>}, {pipeline_mode = #tpu.pipeline_mode<synchronous>, transform_indices = @transform_3, window_bounds = array<i64: 32, 96>}, {pipeline_mode = #tpu.pipeline_mode<synchronous>, transform_indices = @transform_4, window_bounds = array<i64: 4, 8, 32>}, {pipeline_mode = #tpu.pipeline_mode<synchronous>, transform_indices = @transform_5, window_bounds = array<i64: 1, 32>}, {pipeline_mode = #tpu.pipeline_mode<synchronous>, transform_indices = @transform_6, window_bounds = array<i64: 1, 32>}, {pipeline_mode = #tpu.pipeline_mode<synchronous>, transform_indices = @transform_7, window_bounds = array<i64: 1, 32>}, {pipeline_mode = #tpu.pipeline_mode<synchronous>, transform_indices = @transform_8, window_bounds = array<i64: 32, 128>}, {pipeline_mode = #tpu.pipeline_mode<synchronous>, transform_indices = @transform_9, window_bounds = array<i64: 1, 128>}, {pipeline_mode = #tpu.pipeline_mode<synchronous>, transform_indices = @transform_10, window_bounds = array<i64: 128, 32>}, {pipeline_mode = #tpu.pipeline_mode<synchronous>, transform_indices = @transform_11, window_bounds = array<i64: 1, 32>}, {transform_indices = @transform_12, window_bounds = array<i64: 1, 8, 32>}]} {
    %c0 = arith.constant 0 : index
    %c0_0 = arith.constant 0 : index
    %c0_1 = arith.constant 0 : index
    %0 = vector.load %arg1[%c0, %c0_0, %c0_1] : memref<1x8x32xf32, #tpu.memory_space<vmem>>, vector<1x8x32xf32>
    %1 = vector.shape_cast %0 : vector<1x8x32xf32> to vector<8x32xf32>
    %c0_2 = arith.constant 0 : index
    %c0_3 = arith.constant 0 : index
    %2 = vector.load %arg2[%c0_2, %c0_3] : memref<1x32xf32, #tpu.memory_space<vmem>>, vector<1x32xf32>
    %3 = vector.shape_cast %2 : vector<1x32xf32> to vector<32xf32>
    %c0_4 = arith.constant 0 : index
    %c0_5 = arith.constant 0 : index
    %4 = vector.load %arg3[%c0_4, %c0_5] : memref<1x32xf32, #tpu.memory_space<vmem>>, vector<1x32xf32>
    %5 = vector.shape_cast %4 : vector<1x32xf32> to vector<32xf32>
    %cst = arith.constant dense<0.000000e+00> : vector<8xf32>
    %6 = vector.multi_reduction <add>, %1, %cst [1] : vector<8x32xf32> to vector<8xf32>
    %7 = vector.shape_cast %6 : vector<8xf32> to vector<8x1xf32>
    %cst_6 = arith.constant 3.200000e+01 : f32
    %8 = vector.broadcast %cst_6 : f32 to vector<8x1xf32>
    %9 = arith.divf %7, %8 : vector<8x1xf32>
    %10 = vector.broadcast %9 : vector<8x1xf32> to vector<8x32xf32>
    %11 = arith.subf %1, %10 : vector<8x32xf32>
    %12 = arith.mulf %11, %11 : vector<8x32xf32>
    %cst_7 = arith.constant dense<0.000000e+00> : vector<8xf32>
    %13 = vector.multi_reduction <add>, %12, %cst_7 [1] : vector<8x32xf32> to vector<8xf32>
    %14 = vector.shape_cast %13 : vector<8xf32> to vector<8x1xf32>
    %cst_8 = arith.constant 3.200000e+01 : f32
    %15 = vector.broadcast %cst_8 : f32 to vector<8x1xf32>
    %16 = arith.divf %14, %15 : vector<8x1xf32>
    %17 = vector.broadcast %9 : vector<8x1xf32> to vector<8x32xf32>
    %18 = arith.subf %1, %17 : vector<8x32xf32>
    %cst_9 = arith.constant 9.99999974E-6 : f32
    %19 = vector.broadcast %cst_9 : f32 to vector<8x1xf32>
    %20 = arith.addf %16, %19 : vector<8x1xf32>
    %21 = math.rsqrt %20 : vector<8x1xf32>
    %22 = vector.broadcast %21 : vector<8x1xf32> to vector<8x32xf32>
    %23 = arith.mulf %18, %22 : vector<8x32xf32>
    %24 = vector.shape_cast %3 : vector<32xf32> to vector<1x32xf32>
    %25 = vector.broadcast %24 : vector<1x32xf32> to vector<8x32xf32>
    %26 = arith.mulf %23, %25 : vector<8x32xf32>
    %27 = vector.shape_cast %5 : vector<32xf32> to vector<1x32xf32>
    %28 = vector.broadcast %27 : vector<1x32xf32> to vector<8x32xf32>
    %29 = arith.addf %26, %28 : vector<8x32xf32>
    %c0_10 = arith.constant 0 : index
    %c0_11 = arith.constant 0 : index
    %30 = vector.load %arg4[%c0_10, %c0_11] : memref<32x96xf32, #tpu.memory_space<vmem>>, vector<32x96xf32>
    %cst_12 = arith.constant dense<0.000000e+00> : vector<8x96xf32>
    %31 = tpu.matmul %29, %30, %cst_12 {dimension_numbers = #tpu.dot_dimension_numbers<[1], [0], [0], [1], [0, 0, 1, 1], [], []>} : vector<8x32xf32>, vector<32x96xf32>, vector<8x96xf32> -> vector<8x96xf32>
    %32 = tpu.iota {dimensions = array<i32: 0>} : vector<8x8xi32>
    %33 = tpu.iota {dimensions = array<i32: 1>} : vector<8x8xi32>
    %34 = arith.cmpi sle, %33, %32 : vector<8x8xi32>
    %35 = vector.shape_cast %34 : vector<8x8xi1> to vector<1x8x8xi1>
    %cst_13 = arith.constant 0.000000e+00 : f32
    %36 = vector.broadcast %cst_13 : f32 to vector<8x32xf32>
    %37 = vector.extract_strided_slice %31 {offsets = [0, 0], sizes = [8, 8], strides = [1, 1]} : vector<8x96xf32> to vector<8x8xf32>
    %38 = vector.shape_cast %37 : vector<8x8xf32> to vector<1x8x8xf32>
    %39 = vector.extract_strided_slice %31 {offsets = [0, 32], sizes = [8, 8], strides = [1, 1]} : vector<8x96xf32> to vector<8x8xf32>
    %40 = vector.shape_cast %39 : vector<8x8xf32> to vector<1x8x8xf32>
    %41 = vector.extract_strided_slice %31 {offsets = [0, 64], sizes = [8, 8], strides = [1, 1]} : vector<8x96xf32> to vector<8x8xf32>
    %42 = vector.shape_cast %41 : vector<8x8xf32> to vector<1x8x8xf32>
    "tpu.trace_start"() <{level = 10 : i32, message = "bqd,bkd->bqk"}> : () -> ()
    %cst_14 = arith.constant dense<0.000000e+00> : vector<1x8x8xf32>
    %43 = tpu.matmul %38, %40, %cst_14 {dimension_numbers = #tpu.dot_dimension_numbers<[2], [2], [1], [1], [0, 0, 0, 1, 1, 1], [0], [0]>} : vector<1x8x8xf32>, vector<1x8x8xf32>, vector<1x8x8xf32> -> vector<1x8x8xf32>
    %cst_15 = arith.constant -1.000000e+30 : f32
    "tpu.trace_stop"() : () -> ()
    %44 = vector.broadcast %cst_15 : f32 to vector<1x8x8xf32>
    %45 = arith.select %35, %43, %44 : vector<1x8x8xi1>, vector<1x8x8xf32>
    %cst_16 = arith.constant dense<0xFF800000> : vector<1x8xf32>
    %46 = vector.multi_reduction <maximumf>, %45, %cst_16 [2] : vector<1x8x8xf32> to vector<1x8xf32>
    %47 = vector.shape_cast %46 : vector<1x8xf32> to vector<1x8x1xf32>
    %48 = vector.broadcast %47 : vector<1x8x1xf32> to vector<1x8x8xf32>
    %49 = arith.subf %45, %48 : vector<1x8x8xf32>
    %50 = math.exp %49 : vector<1x8x8xf32>
    %cst_17 = arith.constant dense<0.000000e+00> : vector<1x8xf32>
    %51 = vector.multi_reduction <add>, %50, %cst_17 [2] : vector<1x8x8xf32> to vector<1x8xf32>
    %52 = vector.shape_cast %51 : vector<1x8xf32> to vector<1x8x1xf32>
    %53 = tpu.reciprocal %52 {approx = true} : vector<1x8x1xf32> -> vector<1x8x1xf32>
    %54 = vector.broadcast %53 : vector<1x8x1xf32> to vector<1x8x8xf32>
    %55 = arith.mulf %50, %54 : vector<1x8x8xf32>
    "tpu.trace_start"() <{level = 10 : i32, message = "bqk,bkd->bqd"}> : () -> ()
    %cst_18 = arith.constant dense<0.000000e+00> : vector<1x8x8xf32>
    %56 = tpu.matmul %55, %42, %cst_18 {dimension_numbers = #tpu.dot_dimension_numbers<[2], [1], [1], [2], [0, 0, 0, 1, 1, 2], [0], [0]>} : vector<1x8x8xf32>, vector<1x8x8xf32>, vector<1x8x8xf32> -> vector<1x8x8xf32>
    "tpu.trace_stop"() : () -> ()
    %57 = vector.shape_cast %56 : vector<1x8x8xf32> to vector<8x8xf32>
    %c0_19 = arith.constant 0 : index
    %c0_20 = arith.constant 0 : index
    %c0_21 = arith.constant 0 : index
    %58 = vector.load %arg5[%c0_19, %c0_20, %c0_21] : memref<4x8x32xf32, #tpu.memory_space<vmem>>, vector<1x8x32xf32>
    %59 = vector.shape_cast %58 : vector<1x8x32xf32> to vector<8x32xf32>
    %cst_22 = arith.constant dense<0.000000e+00> : vector<8x32xf32>
    %60 = tpu.matmul %57, %59, %cst_22 {dimension_numbers = #tpu.dot_dimension_numbers<[1], [0], [0], [1], [0, 0, 1, 1], [], []>} : vector<8x8xf32>, vector<8x32xf32>, vector<8x32xf32> -> vector<8x32xf32>
    %61 = arith.addf %36, %60 : vector<8x32xf32>
    %62 = vector.extract_strided_slice %31 {offsets = [0, 8], sizes = [8, 8], strides = [1, 1]} : vector<8x96xf32> to vector<8x8xf32>
    %63 = vector.shape_cast %62 : vector<8x8xf32> to vector<1x8x8xf32>
    %64 = vector.extract_strided_slice %31 {offsets = [0, 40], sizes = [8, 8], strides = [1, 1]} : vector<8x96xf32> to vector<8x8xf32>
    %65 = vector.shape_cast %64 : vector<8x8xf32> to vector<1x8x8xf32>
    %66 = vector.extract_strided_slice %31 {offsets = [0, 72], sizes = [8, 8], strides = [1, 1]} : vector<8x96xf32> to vector<8x8xf32>
    %67 = vector.shape_cast %66 : vector<8x8xf32> to vector<1x8x8xf32>
    "tpu.trace_start"() <{level = 10 : i32, message = "bqd,bkd->bqk"}> : () -> ()
    %cst_23 = arith.constant dense<0.000000e+00> : vector<1x8x8xf32>
    %68 = tpu.matmul %63, %65, %cst_23 {dimension_numbers = #tpu.dot_dimension_numbers<[2], [2], [1], [1], [0, 0, 0, 1, 1, 1], [0], [0]>} : vector<1x8x8xf32>, vector<1x8x8xf32>, vector<1x8x8xf32> -> vector<1x8x8xf32>
    %cst_24 = arith.constant -1.000000e+30 : f32
    "tpu.trace_stop"() : () -> ()
    %69 = vector.broadcast %cst_24 : f32 to vector<1x8x8xf32>
    %70 = arith.select %35, %68, %69 : vector<1x8x8xi1>, vector<1x8x8xf32>
    %cst_25 = arith.constant dense<0xFF800000> : vector<1x8xf32>
    %71 = vector.multi_reduction <maximumf>, %70, %cst_25 [2] : vector<1x8x8xf32> to vector<1x8xf32>
    %72 = vector.shape_cast %71 : vector<1x8xf32> to vector<1x8x1xf32>
    %73 = vector.broadcast %72 : vector<1x8x1xf32> to vector<1x8x8xf32>
    %74 = arith.subf %70, %73 : vector<1x8x8xf32>
    %75 = math.exp %74 : vector<1x8x8xf32>
    %cst_26 = arith.constant dense<0.000000e+00> : vector<1x8xf32>
    %76 = vector.multi_reduction <add>, %75, %cst_26 [2] : vector<1x8x8xf32> to vector<1x8xf32>
    %77 = vector.shape_cast %76 : vector<1x8xf32> to vector<1x8x1xf32>
    %78 = tpu.reciprocal %77 {approx = true} : vector<1x8x1xf32> -> vector<1x8x1xf32>
    %79 = vector.broadcast %78 : vector<1x8x1xf32> to vector<1x8x8xf32>
    %80 = arith.mulf %75, %79 : vector<1x8x8xf32>
    "tpu.trace_start"() <{level = 10 : i32, message = "bqk,bkd->bqd"}> : () -> ()
    %cst_27 = arith.constant dense<0.000000e+00> : vector<1x8x8xf32>
    %81 = tpu.matmul %80, %67, %cst_27 {dimension_numbers = #tpu.dot_dimension_numbers<[2], [1], [1], [2], [0, 0, 0, 1, 1, 2], [0], [0]>} : vector<1x8x8xf32>, vector<1x8x8xf32>, vector<1x8x8xf32> -> vector<1x8x8xf32>
    "tpu.trace_stop"() : () -> ()
    %82 = vector.shape_cast %81 : vector<1x8x8xf32> to vector<8x8xf32>
    %c1 = arith.constant 1 : index
    %c0_28 = arith.constant 0 : index
    %c0_29 = arith.constant 0 : index
    %83 = vector.load %arg5[%c1, %c0_28, %c0_29] : memref<4x8x32xf32, #tpu.memory_space<vmem>>, vector<1x8x32xf32>
    %84 = vector.shape_cast %83 : vector<1x8x32xf32> to vector<8x32xf32>
    %cst_30 = arith.constant dense<0.000000e+00> : vector<8x32xf32>
    %85 = tpu.matmul %82, %84, %cst_30 {dimension_numbers = #tpu.dot_dimension_numbers<[1], [0], [0], [1], [0, 0, 1, 1], [], []>} : vector<8x8xf32>, vector<8x32xf32>, vector<8x32xf32> -> vector<8x32xf32>
    %86 = arith.addf %61, %85 : vector<8x32xf32>
    %87 = vector.extract_strided_slice %31 {offsets = [0, 16], sizes = [8, 8], strides = [1, 1]} : vector<8x96xf32> to vector<8x8xf32>
    %88 = vector.shape_cast %87 : vector<8x8xf32> to vector<1x8x8xf32>
    %89 = vector.extract_strided_slice %31 {offsets = [0, 48], sizes = [8, 8], strides = [1, 1]} : vector<8x96xf32> to vector<8x8xf32>
    %90 = vector.shape_cast %89 : vector<8x8xf32> to vector<1x8x8xf32>
    %91 = vector.extract_strided_slice %31 {offsets = [0, 80], sizes = [8, 8], strides = [1, 1]} : vector<8x96xf32> to vector<8x8xf32>
    %92 = vector.shape_cast %91 : vector<8x8xf32> to vector<1x8x8xf32>
    "tpu.trace_start"() <{level = 10 : i32, message = "bqd,bkd->bqk"}> : () -> ()
    %cst_31 = arith.constant dense<0.000000e+00> : vector<1x8x8xf32>
    %93 = tpu.matmul %88, %90, %cst_31 {dimension_numbers = #tpu.dot_dimension_numbers<[2], [2], [1], [1], [0, 0, 0, 1, 1, 1], [0], [0]>} : vector<1x8x8xf32>, vector<1x8x8xf32>, vector<1x8x8xf32> -> vector<1x8x8xf32>
    %cst_32 = arith.constant -1.000000e+30 : f32
    "tpu.trace_stop"() : () -> ()
    %94 = vector.broadcast %cst_32 : f32 to vector<1x8x8xf32>
    %95 = arith.select %35, %93, %94 : vector<1x8x8xi1>, vector<1x8x8xf32>
    %cst_33 = arith.constant dense<0xFF800000> : vector<1x8xf32>
    %96 = vector.multi_reduction <maximumf>, %95, %cst_33 [2] : vector<1x8x8xf32> to vector<1x8xf32>
    %97 = vector.shape_cast %96 : vector<1x8xf32> to vector<1x8x1xf32>
    %98 = vector.broadcast %97 : vector<1x8x1xf32> to vector<1x8x8xf32>
    %99 = arith.subf %95, %98 : vector<1x8x8xf32>
    %100 = math.exp %99 : vector<1x8x8xf32>
    %cst_34 = arith.constant dense<0.000000e+00> : vector<1x8xf32>
    %101 = vector.multi_reduction <add>, %100, %cst_34 [2] : vector<1x8x8xf32> to vector<1x8xf32>
    %102 = vector.shape_cast %101 : vector<1x8xf32> to vector<1x8x1xf32>
    %103 = tpu.reciprocal %102 {approx = true} : vector<1x8x1xf32> -> vector<1x8x1xf32>
    %104 = vector.broadcast %103 : vector<1x8x1xf32> to vector<1x8x8xf32>
    %105 = arith.mulf %100, %104 : vector<1x8x8xf32>
    "tpu.trace_start"() <{level = 10 : i32, message = "bqk,bkd->bqd"}> : () -> ()
    %cst_35 = arith.constant dense<0.000000e+00> : vector<1x8x8xf32>
    %106 = tpu.matmul %105, %92, %cst_35 {dimension_numbers = #tpu.dot_dimension_numbers<[2], [1], [1], [2], [0, 0, 0, 1, 1, 2], [0], [0]>} : vector<1x8x8xf32>, vector<1x8x8xf32>, vector<1x8x8xf32> -> vector<1x8x8xf32>
    "tpu.trace_stop"() : () -> ()
    %107 = vector.shape_cast %106 : vector<1x8x8xf32> to vector<8x8xf32>
    %c2 = arith.constant 2 : index
    %c0_36 = arith.constant 0 : index
    %c0_37 = arith.constant 0 : index
    %108 = vector.load %arg5[%c2, %c0_36, %c0_37] : memref<4x8x32xf32, #tpu.memory_space<vmem>>, vector<1x8x32xf32>
    %109 = vector.shape_cast %108 : vector<1x8x32xf32> to vector<8x32xf32>
    %cst_38 = arith.constant dense<0.000000e+00> : vector<8x32xf32>
    %110 = tpu.matmul %107, %109, %cst_38 {dimension_numbers = #tpu.dot_dimension_numbers<[1], [0], [0], [1], [0, 0, 1, 1], [], []>} : vector<8x8xf32>, vector<8x32xf32>, vector<8x32xf32> -> vector<8x32xf32>
    %111 = arith.addf %86, %110 : vector<8x32xf32>
    %112 = vector.extract_strided_slice %31 {offsets = [0, 24], sizes = [8, 8], strides = [1, 1]} : vector<8x96xf32> to vector<8x8xf32>
    %113 = vector.shape_cast %112 : vector<8x8xf32> to vector<1x8x8xf32>
    %114 = vector.extract_strided_slice %31 {offsets = [0, 56], sizes = [8, 8], strides = [1, 1]} : vector<8x96xf32> to vector<8x8xf32>
    %115 = vector.shape_cast %114 : vector<8x8xf32> to vector<1x8x8xf32>
    %116 = vector.extract_strided_slice %31 {offsets = [0, 88], sizes = [8, 8], strides = [1, 1]} : vector<8x96xf32> to vector<8x8xf32>
    %117 = vector.shape_cast %116 : vector<8x8xf32> to vector<1x8x8xf32>
    "tpu.trace_start"() <{level = 10 : i32, message = "bqd,bkd->bqk"}> : () -> ()
    %cst_39 = arith.constant dense<0.000000e+00> : vector<1x8x8xf32>
    %118 = tpu.matmul %113, %115, %cst_39 {dimension_numbers = #tpu.dot_dimension_numbers<[2], [2], [1], [1], [0, 0, 0, 1, 1, 1], [0], [0]>} : vector<1x8x8xf32>, vector<1x8x8xf32>, vector<1x8x8xf32> -> vector<1x8x8xf32>
    %cst_40 = arith.constant -1.000000e+30 : f32
    "tpu.trace_stop"() : () -> ()
    %119 = vector.broadcast %cst_40 : f32 to vector<1x8x8xf32>
    %120 = arith.select %35, %118, %119 : vector<1x8x8xi1>, vector<1x8x8xf32>
    %cst_41 = arith.constant dense<0xFF800000> : vector<1x8xf32>
    %121 = vector.multi_reduction <maximumf>, %120, %cst_41 [2] : vector<1x8x8xf32> to vector<1x8xf32>
    %122 = vector.shape_cast %121 : vector<1x8xf32> to vector<1x8x1xf32>
    %123 = vector.broadcast %122 : vector<1x8x1xf32> to vector<1x8x8xf32>
    %124 = arith.subf %120, %123 : vector<1x8x8xf32>
    %125 = math.exp %124 : vector<1x8x8xf32>
    %cst_42 = arith.constant dense<0.000000e+00> : vector<1x8xf32>
    %126 = vector.multi_reduction <add>, %125, %cst_42 [2] : vector<1x8x8xf32> to vector<1x8xf32>
    %127 = vector.shape_cast %126 : vector<1x8xf32> to vector<1x8x1xf32>
    %128 = tpu.reciprocal %127 {approx = true} : vector<1x8x1xf32> -> vector<1x8x1xf32>
    %129 = vector.broadcast %128 : vector<1x8x1xf32> to vector<1x8x8xf32>
    %130 = arith.mulf %125, %129 : vector<1x8x8xf32>
    "tpu.trace_start"() <{level = 10 : i32, message = "bqk,bkd->bqd"}> : () -> ()
    %cst_43 = arith.constant dense<0.000000e+00> : vector<1x8x8xf32>
    %131 = tpu.matmul %130, %117, %cst_43 {dimension_numbers = #tpu.dot_dimension_numbers<[2], [1], [1], [2], [0, 0, 0, 1, 1, 2], [0], [0]>} : vector<1x8x8xf32>, vector<1x8x8xf32>, vector<1x8x8xf32> -> vector<1x8x8xf32>
    "tpu.trace_stop"() : () -> ()
    %132 = vector.shape_cast %131 : vector<1x8x8xf32> to vector<8x8xf32>
    %c3 = arith.constant 3 : index
    %c0_44 = arith.constant 0 : index
    %c0_45 = arith.constant 0 : index
    %133 = vector.load %arg5[%c3, %c0_44, %c0_45] : memref<4x8x32xf32, #tpu.memory_space<vmem>>, vector<1x8x32xf32>
    %134 = vector.shape_cast %133 : vector<1x8x32xf32> to vector<8x32xf32>
    %cst_46 = arith.constant dense<0.000000e+00> : vector<8x32xf32>
    %135 = tpu.matmul %132, %134, %cst_46 {dimension_numbers = #tpu.dot_dimension_numbers<[1], [0], [0], [1], [0, 0, 1, 1], [], []>} : vector<8x8xf32>, vector<8x32xf32>, vector<8x32xf32> -> vector<8x32xf32>
    %136 = arith.addf %111, %135 : vector<8x32xf32>
    %137 = arith.addf %1, %136 : vector<8x32xf32>
    %c0_47 = arith.constant 0 : index
    %c0_48 = arith.constant 0 : index
    %138 = vector.load %arg6[%c0_47, %c0_48] : memref<1x32xf32, #tpu.memory_space<vmem>>, vector<1x32xf32>
    %139 = vector.shape_cast %138 : vector<1x32xf32> to vector<32xf32>
    %140 = vector.shape_cast %139 : vector<32xf32> to vector<1x32xf32>
    %141 = vector.broadcast %140 : vector<1x32xf32> to vector<8x32xf32>
    %142 = arith.addf %137, %141 : vector<8x32xf32>
    %c0_49 = arith.constant 0 : index
    %c0_50 = arith.constant 0 : index
    %143 = vector.load %arg7[%c0_49, %c0_50] : memref<1x32xf32, #tpu.memory_space<vmem>>, vector<1x32xf32>
    %144 = vector.shape_cast %143 : vector<1x32xf32> to vector<32xf32>
    %c0_51 = arith.constant 0 : index
    %c0_52 = arith.constant 0 : index
    %145 = vector.load %arg8[%c0_51, %c0_52] : memref<1x32xf32, #tpu.memory_space<vmem>>, vector<1x32xf32>
    %146 = vector.shape_cast %145 : vector<1x32xf32> to vector<32xf32>
    %cst_53 = arith.constant dense<0.000000e+00> : vector<8xf32>
    %147 = vector.multi_reduction <add>, %142, %cst_53 [1] : vector<8x32xf32> to vector<8xf32>
    %148 = vector.shape_cast %147 : vector<8xf32> to vector<8x1xf32>
    %cst_54 = arith.constant 3.200000e+01 : f32
    %149 = vector.broadcast %cst_54 : f32 to vector<8x1xf32>
    %150 = arith.divf %148, %149 : vector<8x1xf32>
    %151 = vector.broadcast %150 : vector<8x1xf32> to vector<8x32xf32>
    %152 = arith.subf %142, %151 : vector<8x32xf32>
    %153 = arith.mulf %152, %152 : vector<8x32xf32>
    %cst_55 = arith.constant dense<0.000000e+00> : vector<8xf32>
    %154 = vector.multi_reduction <add>, %153, %cst_55 [1] : vector<8x32xf32> to vector<8xf32>
    %155 = vector.shape_cast %154 : vector<8xf32> to vector<8x1xf32>
    %cst_56 = arith.constant 3.200000e+01 : f32
    %156 = vector.broadcast %cst_56 : f32 to vector<8x1xf32>
    %157 = arith.divf %155, %156 : vector<8x1xf32>
    %158 = vector.broadcast %150 : vector<8x1xf32> to vector<8x32xf32>
    %159 = arith.subf %142, %158 : vector<8x32xf32>
    %cst_57 = arith.constant 9.99999974E-6 : f32
    %160 = vector.broadcast %cst_57 : f32 to vector<8x1xf32>
    %161 = arith.addf %157, %160 : vector<8x1xf32>
    %162 = math.rsqrt %161 : vector<8x1xf32>
    %163 = vector.broadcast %162 : vector<8x1xf32> to vector<8x32xf32>
    %164 = arith.mulf %159, %163 : vector<8x32xf32>
    %165 = vector.shape_cast %144 : vector<32xf32> to vector<1x32xf32>
    %166 = vector.broadcast %165 : vector<1x32xf32> to vector<8x32xf32>
    %167 = arith.mulf %164, %166 : vector<8x32xf32>
    %168 = vector.shape_cast %146 : vector<32xf32> to vector<1x32xf32>
    %169 = vector.broadcast %168 : vector<1x32xf32> to vector<8x32xf32>
    %170 = arith.addf %167, %169 : vector<8x32xf32>
    %c0_58 = arith.constant 0 : index
    %c0_59 = arith.constant 0 : index
    %171 = vector.load %arg9[%c0_58, %c0_59] : memref<32x128xf32, #tpu.memory_space<vmem>>, vector<32x128xf32>
    %cst_60 = arith.constant dense<0.000000e+00> : vector<8x128xf32>
    %172 = tpu.matmul %170, %171, %cst_60 {dimension_numbers = #tpu.dot_dimension_numbers<[1], [0], [0], [1], [0, 0, 1, 1], [], []>} : vector<8x32xf32>, vector<32x128xf32>, vector<8x128xf32> -> vector<8x128xf32>
    %c0_61 = arith.constant 0 : index
    %c0_62 = arith.constant 0 : index
    %173 = vector.load %arg10[%c0_61, %c0_62] : memref<1x128xf32, #tpu.memory_space<vmem>>, vector<1x128xf32>
    %174 = vector.shape_cast %173 : vector<1x128xf32> to vector<128xf32>
    %175 = vector.shape_cast %174 : vector<128xf32> to vector<1x128xf32>
    %176 = vector.broadcast %175 : vector<1x128xf32> to vector<8x128xf32>
    %177 = arith.addf %172, %176 : vector<8x128xf32>
    %cst_63 = arith.constant 0.000000e+00 : f32
    %178 = vector.broadcast %cst_63 : f32 to vector<8x128xf32>
    %179 = arith.maximumf %177, %178 : vector<8x128xf32>
    %c0_64 = arith.constant 0 : index
    %c0_65 = arith.constant 0 : index
    %180 = vector.load %arg11[%c0_64, %c0_65] : memref<128x32xf32, #tpu.memory_space<vmem>>, vector<128x32xf32>
    %cst_66 = arith.constant dense<0.000000e+00> : vector<8x32xf32>
    %181 = tpu.matmul %179, %180, %cst_66 {dimension_numbers = #tpu.dot_dimension_numbers<[1], [0], [0], [1], [0, 0, 1, 1], [], []>} : vector<8x128xf32>, vector<128x32xf32>, vector<8x32xf32> -> vector<8x32xf32>
    %c0_67 = arith.constant 0 : index
    %c0_68 = arith.constant 0 : index
    %182 = vector.load %arg12[%c0_67, %c0_68] : memref<1x32xf32, #tpu.memory_space<vmem>>, vector<1x32xf32>
    %183 = vector.shape_cast %182 : vector<1x32xf32> to vector<32xf32>
    %184 = vector.shape_cast %183 : vector<32xf32> to vector<1x32xf32>
    %185 = vector.broadcast %184 : vector<1x32xf32> to vector<8x32xf32>
    %186 = arith.addf %181, %185 : vector<8x32xf32>
    %187 = arith.addf %142, %186 : vector<8x32xf32>
    %188 = vector.shape_cast %187 : vector<8x32xf32> to vector<1x8x32xf32>
    %c0_69 = arith.constant 0 : index
    %c0_70 = arith.constant 0 : index
    %c0_71 = arith.constant 0 : index
    %189 = vector.load %arg13[%c0_69, %c0_70, %c0_71] : memref<1x8x32xf32, #tpu.memory_space<vmem>>, vector<1x8x32xf32>
    tpu.vector_store %arg13[%c0_69, %c0_70, %c0_71], %188 {strides = array<i32>} : memref<1x8x32xf32, #tpu.memory_space<vmem>>, vector<1x8x32xf32>,
    return
  }
  func.func @transform_0(%arg0: i32) -> (i32, i32, i32) {
    %c0_i32 = arith.constant 0 : i32
    %c0_i32_0 = arith.constant 0 : i32
    %c0_i32_1 = arith.constant 0 : i32
    return %arg0, %c0_i32, %c0_i32_0 : i32, i32, i32
  }
  func.func @transform_1(%arg0: i32) -> (i32, i32) {
    %c0_i32 = arith.constant 0 : i32
    %c0_i32_0 = arith.constant 0 : i32
    %c0_i32_1 = arith.constant 0 : i32
    return %c0_i32, %c0_i32_0 : i32, i32
  }
  func.func @transform_2(%arg0: i32) -> (i32, i32) {
    %c0_i32 = arith.constant 0 : i32
    %c0_i32_0 = arith.constant 0 : i32
    %c0_i32_1 = arith.constant 0 : i32
    return %c0_i32, %c0_i32_0 : i32, i32
  }
  func.func @transform_3(%arg0: i32) -> (i32, i32) {
    %c0_i32 = arith.constant 0 : i32
    %c0_i32_0 = arith.constant 0 : i32
    %c0_i32_1 = arith.constant 0 : i32
    return %c0_i32, %c0_i32_0 : i32, i32
  }
  func.func @transform_4(%arg0: i32) -> (i32, i32, i32) {
    %c0_i32 = arith.constant 0 : i32
    %c0_i32_0 = arith.constant 0 : i32
    %c0_i32_1 = arith.constant 0 : i32
    %c0_i32_2 = arith.constant 0 : i32
    return %c0_i32, %c0_i32_0, %c0_i32_1 : i32, i32, i32
  }
  func.func @transform_5(%arg0: i32) -> (i32, i32) {
    %c0_i32 = arith.constant 0 : i32
    %c0_i32_0 = arith.constant 0 : i32
    %c0_i32_1 = arith.constant 0 : i32
    return %c0_i32, %c0_i32_0 : i32, i32
  }
  func.func @transform_6(%arg0: i32) -> (i32, i32) {
    %c0_i32 = arith.constant 0 : i32
    %c0_i32_0 = arith.constant 0 : i32
    %c0_i32_1 = arith.constant 0 : i32
    return %c0_i32, %c0_i32_0 : i32, i32
  }
  func.func @transform_7(%arg0: i32) -> (i32, i32) {
    %c0_i32 = arith.constant 0 : i32
    %c0_i32_0 = arith.constant 0 : i32
    %c0_i32_1 = arith.constant 0 : i32
    return %c0_i32, %c0_i32_0 : i32, i32
  }
  func.func @transform_8(%arg0: i32) -> (i32, i32) {
    %c0_i32 = arith.constant 0 : i32
    %c0_i32_0 = arith.constant 0 : i32
    %c0_i32_1 = arith.constant 0 : i32
    return %c0_i32, %c0_i32_0 : i32, i32
  }
  func.func @transform_9(%arg0: i32) -> (i32, i32) {
    %c0_i32 = arith.constant 0 : i32
    %c0_i32_0 = arith.constant 0 : i32
    %c0_i32_1 = arith.constant 0 : i32
    return %c0_i32, %c0_i32_0 : i32, i32
  }
  func.func @transform_10(%arg0: i32) -> (i32, i32) {
    %c0_i32 = arith.constant 0 : i32
    %c0_i32_0 = arith.constant 0 : i32
    %c0_i32_1 = arith.constant 0 : i32
    return %c0_i32, %c0_i32_0 : i32, i32
  }
  func.func @transform_11(%arg0: i32) -> (i32, i32) {
    %c0_i32 = arith.constant 0 : i32
    %c0_i32_0 = arith.constant 0 : i32
    %c0_i32_1 = arith.constant 0 : i32
    return %c0_i32, %c0_i32_0 : i32, i32
  }
  func.func @transform_12(%arg0: i32) -> (i32, i32, i32) {
    %c0_i32 = arith.constant 0 : i32
    %c0_i32_0 = arith.constant 0 : i32
    %c0_i32_1 = arith.constant 0 : i32
    return %arg0, %c0_i32, %c0_i32_0 : i32, i32, i32
  }
}

module attributes {stable_mosaic.version = 11 : i64} {
  func.func @decoder_block_kernel(%arg0: i32, %arg1: memref<1x8x32xf32, #tpu.memory_space<vmem>>, %arg2: memref<1x32xf32, #tpu.memory_space<vmem>>, %arg3: memref<1x32xf32, #tpu.memory_space<vmem>>, %arg4: memref<32x96xf32, #tpu.memory_space<vmem>>, %arg5: memref<4x8x32xf32, #tpu.memory_space<vmem>>, %arg6: memref<1x32xf32, #tpu.memory_space<vmem>>, %arg7: memref<1x32xf32, #tpu.memory_space<vmem>>, %arg8: memref<1x32xf32, #tpu.memory_space<vmem>>, %arg9: memref<32x128xf32, #tpu.memory_space<vmem>>, %arg10: memref<1x128xf32, #tpu.memory_space<vmem>>, %arg11: memref<128x32xf32, #tpu.memory_space<vmem>>, %arg12: memref<1x32xf32, #tpu.memory_space<vmem>>, %arg13: memref<1x8x32xf32, #tpu.memory_space<vmem>>) attributes {dimension_semantics = [#tpu.dimension_semantics<parallel>], iteration_bounds = array<i64: 2>, scalar_prefetch = 0 : i64, scratch_operands = 0 : i64, tpu.core_type = #tpu.core_type<tc>, window_params = [{transform_indices = @transform_0, window_bounds = array<i64: 1, 8, 32>}, {pipeline_mode = #tpu.pipeline_mode<synchronous>, transform_indices = @transform_1, window_bounds = array<i64: 1, 32>}, {pipeline_mode = #tpu.pipeline_mode<synchronous>, transform_indices = @transform_2, window_bounds = array<i64: 1, 32>}, {pipeline_mode = #tpu.pipeline_mode<synchronous>, transform_indices = @transform_3, window_bounds = array<i64: 32, 96>}, {pipeline_mode = #tpu.pipeline_mode<synchronous>, transform_indices = @transform_4, window_bounds = array<i64: 4, 8, 32>}, {pipeline_mode = #tpu.pipeline_mode<synchronous>, transform_indices = @transform_5, window_bounds = array<i64: 1, 32>}, {pipeline_mode = #tpu.pipeline_mode<synchronous>, transform_indices = @transform_6, window_bounds = array<i64: 1, 32>}, {pipeline_mode = #tpu.pipeline_mode<synchronous>, transform_indices = @transform_7, window_bounds = array<i64: 1, 32>}, {pipeline_mode = #tpu.pipeline_mode<synchronous>, transform_indices = @transform_8, window_bounds = array<i64: 32, 128>}, {pipeline_mode = #tpu.pipeline_mode<synchronous>, transform_indices = @transform_9, window_bounds = array<i64: 1, 128>}, {pipeline_mode = #tpu.pipeline_mode<synchronous>, transform_indices = @transform_10, window_bounds = array<i64: 128, 32>}, {pipeline_mode = #tpu.pipeline_mode<synchronous>, transform_indices = @transform_11, window_bounds = array<i64: 1, 32>}, {transform_indices = @transform_12, window_bounds = array<i64: 1, 8, 32>}]} {
    %c0 = arith.constant 0 : index
    %c0_0 = arith.constant 0 : index
    %c0_1 = arith.constant 0 : index
    %0 = vector.load %arg1[%c0, %c0_0, %c0_1] : memref<1x8x32xf32, #tpu.memory_space<vmem>>, vector<1x8x32xf32>
    %1 = vector.shape_cast %0 : vector<1x8x32xf32> to vector<8x32xf32>
    %c0_2 = arith.constant 0 : index
    %c0_3 = arith.constant 0 : index
    %2 = vector.load %arg2[%c0_2, %c0_3] : memref<1x32xf32, #tpu.memory_space<vmem>>, vector<1x32xf32>
    %3 = vector.shape_cast %2 : vector<1x32xf32> to vector<32xf32>
    %c0_4 = arith.constant 0 : index
    %c0_5 = arith.constant 0 : index
    %4 = vector.load %arg3[%c0_4, %c0_5] : memref<1x32xf32, #tpu.memory_space<vmem>>, vector<1x32xf32>
    %5 = vector.shape_cast %4 : vector<1x32xf32> to vector<32xf32>
    %cst = arith.constant dense<0.000000e+00> : vector<8xf32>
    %6 = vector.multi_reduction <add>, %1, %cst [1] : vector<8x32xf32> to vector<8xf32>
    %7 = vector.shape_cast %6 : vector<8xf32> to vector<8x1xf32>
    %cst_6 = arith.constant 3.200000e+01 : f32
    %8 = vector.broadcast %cst_6 : f32 to vector<8x1xf32>
    %9 = arith.divf %7, %8 : vector<8x1xf32>
    %10 = vector.broadcast %9 : vector<8x1xf32> to vector<8x32xf32>
    %11 = arith.subf %1, %10 : vector<8x32xf32>
    %12 = arith.mulf %11, %11 : vector<8x32xf32>
    %cst_7 = arith.constant dense<0.000000e+00> : vector<8xf32>
    %13 = vector.multi_reduction <add>, %12, %cst_7 [1] : vector<8x32xf32> to vector<8xf32>
    %14 = vector.shape_cast %13 : vector<8xf32> to vector<8x1xf32>
    %cst_8 = arith.constant 3.200000e+01 : f32
    %15 = vector.broadcast %cst_8 : f32 to vector<8x1xf32>
    %16 = arith.divf %14, %15 : vector<8x1xf32>
    %17 = vector.broadcast %9 : vector<8x1xf32> to vector<8x32xf32>
    %18 = arith.subf %1, %17 : vector<8x32xf32>
    %cst_9 = arith.constant 9.99999974E-6 : f32
    %19 = vector.broadcast %cst_9 : f32 to vector<8x1xf32>
    %20 = arith.addf %16, %19 : vector<8x1xf32>
    %21 = math.rsqrt %20 : vector<8x1xf32>
    %22 = vector.broadcast %21 : vector<8x1xf32> to vector<8x32xf32>
    %23 = arith.mulf %18, %22 : vector<8x32xf32>
    %24 = vector.shape_cast %3 : vector<32xf32> to vector<1x32xf32>
    %25 = vector.broadcast %24 : vector<1x32xf32> to vector<8x32xf32>
    %26 = arith.mulf %23, %25 : vector<8x32xf32>
    %27 = vector.shape_cast %5 : vector<32xf32> to vector<1x32xf32>
    %28 = vector.broadcast %27 : vector<1x32xf32> to vector<8x32xf32>
    %29 = arith.addf %26, %28 : vector<8x32xf32>
    %c0_10 = arith.constant 0 : index
    %c0_11 = arith.constant 0 : index
    %30 = vector.load %arg4[%c0_10, %c0_11] : memref<32x96xf32, #tpu.memory_space<vmem>>, vector<32x96xf32>
    %cst_12 = arith.constant dense<0.000000e+00> : vector<8x96xf32>
    %31 = tpu.matmul %29, %30, %cst_12 {dimension_numbers = #tpu.dot_dimension_numbers<[1], [0], [0], [1], [0, 0, 1, 1], [], []>} : vector<8x32xf32>, vector<32x96xf32>, vector<8x96xf32> -> vector<8x96xf32>
    %32 = tpu.iota {dimensions = array<i32: 0>} : vector<8x8xi32>
    %33 = tpu.iota {dimensions = array<i32: 1>} : vector<8x8xi32>
    %34 = arith.cmpi sle, %33, %32 : vector<8x8xi32>
    %35 = vector.shape_cast %34 : vector<8x8xi1> to vector<1x8x8xi1>
    %cst_13 = arith.constant 0.000000e+00 : f32
    %36 = vector.broadcast %cst_13 : f32 to vector<8x32xf32>
    %37 = vector.extract_strided_slice %31 {offsets = [0, 0], sizes = [8, 8], strides = [1, 1]} : vector<8x96xf32> to vector<8x8xf32>
    %38 = vector.shape_cast %37 : vector<8x8xf32> to vector<1x8x8xf32>
    %39 = vector.extract_strided_slice %31 {offsets = [0, 32], sizes = [8, 8], strides = [1, 1]} : vector<8x96xf32> to vector<8x8xf32>
    %40 = vector.shape_cast %39 : vector<8x8xf32> to vector<1x8x8xf32>
    %41 = vector.extract_strided_slice %31 {offsets = [0, 64], sizes = [8, 8], strides = [1, 1]} : vector<8x96xf32> to vector<8x8xf32>
    %42 = vector.shape_cast %41 : vector<8x8xf32> to vector<1x8x8xf32>
    "tpu.trace_start"() <{level = 10 : i32, message = "bqd,bkd->bqk"}> : () -> ()
    %cst_14 = arith.constant dense<0.000000e+00> : vector<1x8x8xf32>
    %43 = tpu.matmul %38, %40, %cst_14 {dimension_numbers = #tpu.dot_dimension_numbers<[2], [2], [1], [1], [0, 0, 0, 1, 1, 1], [0], [0]>} : vector<1x8x8xf32>, vector<1x8x8xf32>, vector<1x8x8xf32> -> vector<1x8x8xf32>
    %cst_15 = arith.constant -1.000000e+30 : f32
    "tpu.trace_stop"() : () -> ()
    %44 = vector.broadcast %cst_15 : f32 to vector<1x8x8xf32>
    %45 = arith.select %35, %43, %44 : vector<1x8x8xi1>, vector<1x8x8xf32>
    %cst_16 = arith.constant dense<0xFF800000> : vector<1x8xf32>
    %46 = vector.multi_reduction <maximumf>, %45, %cst_16 [2] : vector<1x8x8xf32> to vector<1x8xf32>
    %47 = vector.shape_cast %46 : vector<1x8xf32> to vector<1x8x1xf32>
    %48 = vector.broadcast %47 : vector<1x8x1xf32> to vector<1x8x8xf32>
    %49 = arith.subf %45, %48 : vector<1x8x8xf32>
    %50 = math.exp %49 : vector<1x8x8xf32>
    %cst_17 = arith.constant dense<0.000000e+00> : vector<1x8xf32>
    %51 = vector.multi_reduction <add>, %50, %cst_17 [2] : vector<1x8x8xf32> to vector<1x8xf32>
    %52 = vector.shape_cast %51 : vector<1x8xf32> to vector<1x8x1xf32>
    %53 = tpu.reciprocal %52 {approx = true} : vector<1x8x1xf32> -> vector<1x8x1xf32>
    %54 = vector.broadcast %53 : vector<1x8x1xf32> to vector<1x8x8xf32>
    %55 = arith.mulf %50, %54 : vector<1x8x8xf32>
    "tpu.trace_start"() <{level = 10 : i32, message = "bqk,bkd->bqd"}> : () -> ()
    %cst_18 = arith.constant dense<0.000000e+00> : vector<1x8x8xf32>
    %56 = tpu.matmul %55, %42, %cst_18 {dimension_numbers = #tpu.dot_dimension_numbers<[2], [1], [1], [2], [0, 0, 0, 1, 1, 2], [0], [0]>} : vector<1x8x8xf32>, vector<1x8x8xf32>, vector<1x8x8xf32> -> vector<1x8x8xf32>
    "tpu.trace_stop"() : () -> ()
    %57 = vector.shape_cast %56 : vector<1x8x8xf32> to vector<8x8xf32>
    %c0_19 = arith.constant 0 : index
    %c0_20 = arith.constant 0 : index
    %c0_21 = arith.constant 0 : index
    %58 = vector.load %arg5[%c0_19, %c0_20, %c0_21] : memref<4x8x32xf32, #tpu.memory_space<vmem>>, vector<1x8x32xf32>
    %59 = vector.shape_cast %58 : vector<1x8x32xf32> to vector<8x32xf32>
    %cst_22 = arith.constant dense<0.000000e+00> : vector<8x32xf32>
    %60 = tpu.matmul %57, %59, %cst_22 {dimension_numbers = #tpu.dot_dimension_numbers<[1], [0], [0], [1], [0, 0, 1, 1], [], []>} : vector<8x8xf32>, vector<8x32xf32>, vector<8x32xf32> -> vector<8x32xf32>
    %61 = arith.addf %36, %60 : vector<8x32xf32>
    %62 = vector.extract_strided_slice %31 {offsets = [0, 8], sizes = [8, 8], strides = [1, 1]} : vector<8x96xf32> to vector<8x8xf32>
    %63 = vector.shape_cast %62 : vector<8x8xf32> to vector<1x8x8xf32>
    %64 = vector.extract_strided_slice %31 {offsets = [0, 40], sizes = [8, 8], strides = [1, 1]} : vector<8x96xf32> to vector<8x8xf32>
    %65 = vector.shape_cast %64 : vector<8x8xf32> to vector<1x8x8xf32>
    %66 = vector.extract_strided_slice %31 {offsets = [0, 72], sizes = [8, 8], strides = [1, 1]} : vector<8x96xf32> to vector<8x8xf32>
    %67 = vector.shape_cast %66 : vector<8x8xf32> to vector<1x8x8xf32>
    "tpu.trace_start"() <{level = 10 : i32, message = "bqd,bkd->bqk"}> : () -> ()
    %cst_23 = arith.constant dense<0.000000e+00> : vector<1x8x8xf32>
    %68 = tpu.matmul %63, %65, %cst_23 {dimension_numbers = #tpu.dot_dimension_numbers<[2], [2], [1], [1], [0, 0, 0, 1, 1, 1], [0], [0]>} : vector<1x8x8xf32>, vector<1x8x8xf32>, vector<1x8x8xf32> -> vector<1x8x8xf32>
    %cst_24 = arith.constant -1.000000e+30 : f32
    "tpu.trace_stop"() : () -> ()
    %69 = vector.broadcast %cst_24 : f32 to vector<1x8x8xf32>
    %70 = arith.select %35, %68, %69 : vector<1x8x8xi1>, vector<1x8x8xf32>
    %cst_25 = arith.constant dense<0xFF800000> : vector<1x8xf32>
    %71 = vector.multi_reduction <maximumf>, %70, %cst_25 [2] : vector<1x8x8xf32> to vector<1x8xf32>
    %72 = vector.shape_cast %71 : vector<1x8xf32> to vector<1x8x1xf32>
    %73 = vector.broadcast %72 : vector<1x8x1xf32> to vector<1x8x8xf32>
    %74 = arith.subf %70, %73 : vector<1x8x8xf32>
    %75 = math.exp %74 : vector<1x8x8xf32>
    %cst_26 = arith.constant dense<0.000000e+00> : vector<1x8xf32>
    %76 = vector.multi_reduction <add>, %75, %cst_26 [2] : vector<1x8x8xf32> to vector<1x8xf32>
    %77 = vector.shape_cast %76 : vector<1x8xf32> to vector<1x8x1xf32>
    %78 = tpu.reciprocal %77 {approx = true} : vector<1x8x1xf32> -> vector<1x8x1xf32>
    %79 = vector.broadcast %78 : vector<1x8x1xf32> to vector<1x8x8xf32>
    %80 = arith.mulf %75, %79 : vector<1x8x8xf32>
    "tpu.trace_start"() <{level = 10 : i32, message = "bqk,bkd->bqd"}> : () -> ()
    %cst_27 = arith.constant dense<0.000000e+00> : vector<1x8x8xf32>
    %81 = tpu.matmul %80, %67, %cst_27 {dimension_numbers = #tpu.dot_dimension_numbers<[2], [1], [1], [2], [0, 0, 0, 1, 1, 2], [0], [0]>} : vector<1x8x8xf32>, vector<1x8x8xf32>, vector<1x8x8xf32> -> vector<1x8x8xf32>
    "tpu.trace_stop"() : () -> ()
    %82 = vector.shape_cast %81 : vector<1x8x8xf32> to vector<8x8xf32>
    %c1 = arith.constant 1 : index
    %c0_28 = arith.constant 0 : index
    %c0_29 = arith.constant 0 : index
    %83 = vector.load %arg5[%c1, %c0_28, %c0_29] : memref<4x8x32xf32, #tpu.memory_space<vmem>>, vector<1x8x32xf32>
    %84 = vector.shape_cast %83 : vector<1x8x32xf32> to vector<8x32xf32>
    %cst_30 = arith.constant dense<0.000000e+00> : vector<8x32xf32>
    %85 = tpu.matmul %82, %84, %cst_30 {dimension_numbers = #tpu.dot_dimension_numbers<[1], [0], [0], [1], [0, 0, 1, 1], [], []>} : vector<8x8xf32>, vector<8x32xf32>, vector<8x32xf32> -> vector<8x32xf32>
    %86 = arith.addf %61, %85 : vector<8x32xf32>
    %87 = vector.extract_strided_slice %31 {offsets = [0, 16], sizes = [8, 8], strides = [1, 1]} : vector<8x96xf32> to vector<8x8xf32>
    %88 = vector.shape_cast %87 : vector<8x8xf32> to vector<1x8x8xf32>
    %89 = vector.extract_strided_slice %31 {offsets = [0, 48], sizes = [8, 8], strides = [1, 1]} : vector<8x96xf32> to vector<8x8xf32>
    %90 = vector.shape_cast %89 : vector<8x8xf32> to vector<1x8x8xf32>
    %91 = vector.extract_strided_slice %31 {offsets = [0, 80], sizes = [8, 8], strides = [1, 1]} : vector<8x96xf32> to vector<8x8xf32>
    %92 = vector.shape_cast %91 : vector<8x8xf32> to vector<1x8x8xf32>
    "tpu.trace_start"() <{level = 10 : i32, message = "bqd,bkd->bqk"}> : () -> ()
    %cst_31 = arith.constant dense<0.000000e+00> : vector<1x8x8xf32>
    %93 = tpu.matmul %88, %90, %cst_31 {dimension_numbers = #tpu.dot_dimension_numbers<[2], [2], [1], [1], [0, 0, 0, 1, 1, 1], [0], [0]>} : vector<1x8x8xf32>, vector<1x8x8xf32>, vector<1x8x8xf32> -> vector<1x8x8xf32>
    %cst_32 = arith.constant -1.000000e+30 : f32
    "tpu.trace_stop"() : () -> ()
    %94 = vector.broadcast %cst_32 : f32 to vector<1x8x8xf32>
    %95 = arith.select %35, %93, %94 : vector<1x8x8xi1>, vector<1x8x8xf32>
    %cst_33 = arith.constant dense<0xFF800000> : vector<1x8xf32>
    %96 = vector.multi_reduction <maximumf>, %95, %cst_33 [2] : vector<1x8x8xf32> to vector<1x8xf32>
    %97 = vector.shape_cast %96 : vector<1x8xf32> to vector<1x8x1xf32>
    %98 = vector.broadcast %97 : vector<1x8x1xf32> to vector<1x8x8xf32>
    %99 = arith.subf %95, %98 : vector<1x8x8xf32>
    %100 = math.exp %99 : vector<1x8x8xf32>
    %cst_34 = arith.constant dense<0.000000e+00> : vector<1x8xf32>
    %101 = vector.multi_reduction <add>, %100, %cst_34 [2] : vector<1x8x8xf32> to vector<1x8xf32>
    %102 = vector.shape_cast %101 : vector<1x8xf32> to vector<1x8x1xf32>
    %103 = tpu.reciprocal %102 {approx = true} : vector<1x8x1xf32> -> vector<1x8x1xf32>
    %104 = vector.broadcast %103 : vector<1x8x1xf32> to vector<1x8x8xf32>
    %105 = arith.mulf %100, %104 : vector<1x8x8xf32>
    "tpu.trace_start"() <{level = 10 : i32, message = "bqk,bkd->bqd"}> : () -> ()
    %cst_35 = arith.constant dense<0.000000e+00> : vector<1x8x8xf32>
    %106 = tpu.matmul %105, %92, %cst_35 {dimension_numbers = #tpu.dot_dimension_numbers<[2], [1], [1], [2], [0, 0, 0, 1, 1, 2], [0], [0]>} : vector<1x8x8xf32>, vector<1x8x8xf32>, vector<1x8x8xf32> -> vector<1x8x8xf32>
    "tpu.trace_stop"() : () -> ()
    %107 = vector.shape_cast %106 : vector<1x8x8xf32> to vector<8x8xf32>
    %c2 = arith.constant 2 : index
    %c0_36 = arith.constant 0 : index
    %c0_37 = arith.constant 0 : index
    %108 = vector.load %arg5[%c2, %c0_36, %c0_37] : memref<4x8x32xf32, #tpu.memory_space<vmem>>, vector<1x8x32xf32>
    %109 = vector.shape_cast %108 : vector<1x8x32xf32> to vector<8x32xf32>
    %cst_38 = arith.constant dense<0.000000e+00> : vector<8x32xf32>
    %110 = tpu.matmul %107, %109, %cst_38 {dimension_numbers = #tpu.dot_dimension_numbers<[1], [0], [0], [1], [0, 0, 1, 1], [], []>} : vector<8x8xf32>, vector<8x32xf32>, vector<8x32xf32> -> vector<8x32xf32>
    %111 = arith.addf %86, %110 : vector<8x32xf32>
    %112 = vector.extract_strided_slice %31 {offsets = [0, 24], sizes = [8, 8], strides = [1, 1]} : vector<8x96xf32> to vector<8x8xf32>
    %113 = vector.shape_cast %112 : vector<8x8xf32> to vector<1x8x8xf32>
    %114 = vector.extract_strided_slice %31 {offsets = [0, 56], sizes = [8, 8], strides = [1, 1]} : vector<8x96xf32> to vector<8x8xf32>
    %115 = vector.shape_cast %114 : vector<8x8xf32> to vector<1x8x8xf32>
    %116 = vector.extract_strided_slice %31 {offsets = [0, 88], sizes = [8, 8], strides = [1, 1]} : vector<8x96xf32> to vector<8x8xf32>
    %117 = vector.shape_cast %116 : vector<8x8xf32> to vector<1x8x8xf32>
    "tpu.trace_start"() <{level = 10 : i32, message = "bqd,bkd->bqk"}> : () -> ()
    %cst_39 = arith.constant dense<0.000000e+00> : vector<1x8x8xf32>
    %118 = tpu.matmul %113, %115, %cst_39 {dimension_numbers = #tpu.dot_dimension_numbers<[2], [2], [1], [1], [0, 0, 0, 1, 1, 1], [0], [0]>} : vector<1x8x8xf32>, vector<1x8x8xf32>, vector<1x8x8xf32> -> vector<1x8x8xf32>
    %cst_40 = arith.constant -1.000000e+30 : f32
    "tpu.trace_stop"() : () -> ()
    %119 = vector.broadcast %cst_40 : f32 to vector<1x8x8xf32>
    %120 = arith.select %35, %118, %119 : vector<1x8x8xi1>, vector<1x8x8xf32>
    %cst_41 = arith.constant dense<0xFF800000> : vector<1x8xf32>
    %121 = vector.multi_reduction <maximumf>, %120, %cst_41 [2] : vector<1x8x8xf32> to vector<1x8xf32>
    %122 = vector.shape_cast %121 : vector<1x8xf32> to vector<1x8x1xf32>
    %123 = vector.broadcast %122 : vector<1x8x1xf32> to vector<1x8x8xf32>
    %124 = arith.subf %120, %123 : vector<1x8x8xf32>
    %125 = math.exp %124 : vector<1x8x8xf32>
    %cst_42 = arith.constant dense<0.000000e+00> : vector<1x8xf32>
    %126 = vector.multi_reduction <add>, %125, %cst_42 [2] : vector<1x8x8xf32> to vector<1x8xf32>
    %127 = vector.shape_cast %126 : vector<1x8xf32> to vector<1x8x1xf32>
    %128 = tpu.reciprocal %127 {approx = true} : vector<1x8x1xf32> -> vector<1x8x1xf32>
    %129 = vector.broadcast %128 : vector<1x8x1xf32> to vector<1x8x8xf32>
    %130 = arith.mulf %125, %129 : vector<1x8x8xf32>
    "tpu.trace_start"() <{level = 10 : i32, message = "bqk,bkd->bqd"}> : () -> ()
    %cst_43 = arith.constant dense<0.000000e+00> : vector<1x8x8xf32>
    %131 = tpu.matmul %130, %117, %cst_43 {dimension_numbers = #tpu.dot_dimension_numbers<[2], [1], [1], [2], [0, 0, 0, 1, 1, 2], [0], [0]>} : vector<1x8x8xf32>, vector<1x8x8xf32>, vector<1x8x8xf32> -> vector<1x8x8xf32>
    "tpu.trace_stop"() : () -> ()
    %132 = vector.shape_cast %131 : vector<1x8x8xf32> to vector<8x8xf32>
    %c3 = arith.constant 3 : index
    %c0_44 = arith.constant 0 : index
    %c0_45 = arith.constant 0 : index
    %133 = vector.load %arg5[%c3, %c0_44, %c0_45] : memref<4x8x32xf32, #tpu.memory_space<vmem>>, vector<1x8x32xf32>
    %134 = vector.shape_cast %133 : vector<1x8x32xf32> to vector<8x32xf32>
    %cst_46 = arith.constant dense<0.000000e+00> : vector<8x32xf32>
    %135 = tpu.matmul %132, %134, %cst_46 {dimension_numbers = #tpu.dot_dimension_numbers<[1], [0], [0], [1], [0, 0, 1, 1], [], []>} : vector<8x8xf32>, vector<8x32xf32>, vector<8x32xf32> -> vector<8x32xf32>
    %136 = arith.addf %111, %135 : vector<8x32xf32>
    %137 = arith.addf %1, %136 : vector<8x32xf32>
    %c0_47 = arith.constant 0 : index
    %c0_48 = arith.constant 0 : index
    %138 = vector.load %arg6[%c0_47, %c0_48] : memref<1x32xf32, #tpu.memory_space<vmem>>, vector<1x32xf32>
    %139 = vector.shape_cast %138 : vector<1x32xf32> to vector<32xf32>
    %140 = vector.shape_cast %139 : vector<32xf32> to vector<1x32xf32>
    %141 = vector.broadcast %140 : vector<1x32xf32> to vector<8x32xf32>
    %142 = arith.addf %137, %141 : vector<8x32xf32>
    %c0_49 = arith.constant 0 : index
    %c0_50 = arith.constant 0 : index
    %143 = vector.load %arg7[%c0_49, %c0_50] : memref<1x32xf32, #tpu.memory_space<vmem>>, vector<1x32xf32>
    %144 = vector.shape_cast %143 : vector<1x32xf32> to vector<32xf32>
    %c0_51 = arith.constant 0 : index
    %c0_52 = arith.constant 0 : index
    %145 = vector.load %arg8[%c0_51, %c0_52] : memref<1x32xf32, #tpu.memory_space<vmem>>, vector<1x32xf32>
    %146 = vector.shape_cast %145 : vector<1x32xf32> to vector<32xf32>
    %cst_53 = arith.constant dense<0.000000e+00> : vector<8xf32>
    %147 = vector.multi_reduction <add>, %142, %cst_53 [1] : vector<8x32xf32> to vector<8xf32>
    %148 = vector.shape_cast %147 : vector<8xf32> to vector<8x1xf32>
    %cst_54 = arith.constant 3.200000e+01 : f32
    %149 = vector.broadcast %cst_54 : f32 to vector<8x1xf32>
    %150 = arith.divf %148, %149 : vector<8x1xf32>
    %151 = vector.broadcast %150 : vector<8x1xf32> to vector<8x32xf32>
    %152 = arith.subf %142, %151 : vector<8x32xf32>
    %153 = arith.mulf %152, %152 : vector<8x32xf32>
    %cst_55 = arith.constant dense<0.000000e+00> : vector<8xf32>
    %154 = vector.multi_reduction <add>, %153, %cst_55 [1] : vector<8x32xf32> to vector<8xf32>
    %155 = vector.shape_cast %154 : vector<8xf32> to vector<8x1xf32>
    %cst_56 = arith.constant 3.200000e+01 : f32
    %156 = vector.broadcast %cst_56 : f32 to vector<8x1xf32>
    %157 = arith.divf %155, %156 : vector<8x1xf32>
    %158 = vector.broadcast %150 : vector<8x1xf32> to vector<8x32xf32>
    %159 = arith.subf %142, %158 : vector<8x32xf32>
    %cst_57 = arith.constant 9.99999974E-6 : f32
    %160 = vector.broadcast %cst_57 : f32 to vector<8x1xf32>
    %161 = arith.addf %157, %160 : vector<8x1xf32>
    %162 = math.rsqrt %161 : vector<8x1xf32>
    %163 = vector.broadcast %162 : vector<8x1xf32> to vector<8x32xf32>
    %164 = arith.mulf %159, %163 : vector<8x32xf32>
    %165 = vector.shape_cast %144 : vector<32xf32> to vector<1x32xf32>
    %166 = vector.broadcast %165 : vector<1x32xf32> to vector<8x32xf32>
    %167 = arith.mulf %164, %166 : vector<8x32xf32>
    %168 = vector.shape_cast %146 : vector<32xf32> to vector<1x32xf32>
    %169 = vector.broadcast %168 : vector<1x32xf32> to vector<8x32xf32>
    %170 = arith.addf %167, %169 : vector<8x32xf32>
    %c0_58 = arith.constant 0 : index
    %c0_59 = arith.constant 0 : index
    %171 = vector.load %arg9[%c0_58, %c0_59] : memref<32x128xf32, #tpu.memory_space<vmem>>, vector<32x128xf32>
    %cst_60 = arith.constant dense<0.000000e+00> : vector<8x128xf32>
    %172 = tpu.matmul %170, %171, %cst_60 {dimension_numbers = #tpu.dot_dimension_numbers<[1], [0], [0], [1], [0, 0, 1, 1], [], []>} : vector<8x32xf32>, vector<32x128xf32>, vector<8x128xf32> -> vector<8x128xf32>
    %c0_61 = arith.constant 0 : index
    %c0_62 = arith.constant 0 : index
    %173 = vector.load %arg10[%c0_61, %c0_62] : memref<1x128xf32, #tpu.memory_space<vmem>>, vector<1x128xf32>
    %174 = vector.shape_cast %173 : vector<1x128xf32> to vector<128xf32>
    %175 = vector.shape_cast %174 : vector<128xf32> to vector<1x128xf32>
    %176 = vector.broadcast %175 : vector<1x128xf32> to vector<8x128xf32>
    %177 = arith.addf %172, %176 : vector<8x128xf32>
    %cst_63 = arith.constant 0.000000e+00 : f32
    %178 = vector.broadcast %cst_63 : f32 to vector<8x128xf32>
    %179 = arith.maximumf %177, %178 : vector<8x128xf32>
    %c0_64 = arith.constant 0 : index
    %c0_65 = arith.constant 0 : index
    %180 = vector.load %arg11[%c0_64, %c0_65] : memref<128x32xf32, #tpu.memory_space<vmem>>, vector<128x32xf32>
    %cst_66 = arith.constant dense<0.000000e+00> : vector<8x32xf32>
    %181 = tpu.matmul %179, %180, %cst_66 {dimension_numbers = #tpu.dot_dimension_numbers<[1], [0], [0], [1], [0, 0, 1, 1], [], []>} : vector<8x128xf32>, vector<128x32xf32>, vector<8x32xf32> -> vector<8x32xf32>
    %c0_67 = arith.constant 0 : index
    %c0_68 = arith.constant 0 : index
    %182 = vector.load %arg12[%c0_67, %c0_68] : memref<1x32xf32, #tpu.memory_space<vmem>>, vector<1x32xf32>
    %183 = vector.shape_cast %182 : vector<1x32xf32> to vector<32xf32>
    %184 = vector.shape_cast %183 : vector<32xf32> to vector<1x32xf32>
    %185 = vector.broadcast %184 : vector<1x32xf32> to vector<8x32xf32>
    %186 = arith.addf %181, %185 : vector<8x32xf32>
    %187 = arith.addf %142, %186 : vector<8x32xf32>
    %188 = vector.shape_cast %187 : vector<8x32xf32> to vector<1x8x32xf32>
    %c0_69 = arith.constant 0 : index
    %c0_70 = arith.constant 0 : index
    %c0_71 = arith.constant 0 : index
    %189 = vector.load %arg13[%c0_69, %c0_70, %c0_71] : memref<1x8x32xf32, #tpu.memory_space<vmem>>, vector<1x8x32xf32>
    tpu.vector_store %arg13[%c0_69, %c0_70, %c0_71], %188 {strides = array<i32>} : memref<1x8x32xf32, #tpu.memory_space<vmem>>, vector<1x8x32xf32>,
    return
  }
  func.func @transform_0(%arg0: i32) -> (i32, i32, i32) {
    %c0_i32 = arith.constant 0 : i32
    %c0_i32_0 = arith.constant 0 : i32
    %c0_i32_1 = arith.constant 0 : i32
    return %arg0, %c0_i32, %c0_i32_0 : i32, i32, i32
  }
  func.func @transform_1(%arg0: i32) -> (i32, i32) {
    %c0_i32 = arith.constant 0 : i32
    %c0_i32_0 = arith.constant 0 : i32
    %c0_i32_1 = arith.constant 0 : i32
    return %c0_i32, %c0_i32_0 : i32, i32
  }
  func.func @transform_2(%arg0: i32) -> (i32, i32) {
    %c0_i32 = arith.constant 0 : i32
    %c0_i32_0 = arith.constant 0 : i32
    %c0_i32_1 = arith.constant 0 : i32
    return %c0_i32, %c0_i32_0 : i32, i32
  }
  func.func @transform_3(%arg0: i32) -> (i32, i32) {
    %c0_i32 = arith.constant 0 : i32
    %c0_i32_0 = arith.constant 0 : i32
    %c0_i32_1 = arith.constant 0 : i32
    return %c0_i32, %c0_i32_0 : i32, i32
  }
  func.func @transform_4(%arg0: i32) -> (i32, i32, i32) {
    %c0_i32 = arith.constant 0 : i32
    %c0_i32_0 = arith.constant 0 : i32
    %c0_i32_1 = arith.constant 0 : i32
    %c0_i32_2 = arith.constant 0 : i32
    return %c0_i32, %c0_i32_0, %c0_i32_1 : i32, i32, i32
  }
  func.func @transform_5(%arg0: i32) -> (i32, i32) {
    %c0_i32 = arith.constant 0 : i32
    %c0_i32_0 = arith.constant 0 : i32
    %c0_i32_1 = arith.constant 0 : i32
    return %c0_i32, %c0_i32_0 : i32, i32
  }
  func.func @transform_6(%arg0: i32) -> (i32, i32) {
    %c0_i32 = arith.constant 0 : i32
    %c0_i32_0 = arith.constant 0 : i32
    %c0_i32_1 = arith.constant 0 : i32
    return %c0_i32, %c0_i32_0 : i32, i32
  }
  func.func @transform_7(%arg0: i32) -> (i32, i32) {
    %c0_i32 = arith.constant 0 : i32
    %c0_i32_0 = arith.constant 0 : i32
    %c0_i32_1 = arith.constant 0 : i32
    return %c0_i32, %c0_i32_0 : i32, i32
  }
  func.func @transform_8(%arg0: i32) -> (i32, i32) {
    %c0_i32 = arith.constant 0 : i32
    %c0_i32_0 = arith.constant 0 : i32
    %c0_i32_1 = arith.constant 0 : i32
    return %c0_i32, %c0_i32_0 : i32, i32
  }
  func.func @transform_9(%arg0: i32) -> (i32, i32) {
    %c0_i32 = arith.constant 0 : i32
    %c0_i32_0 = arith.constant 0 : i32
    %c0_i32_1 = arith.constant 0 : i32
    return %c0_i32, %c0_i32_0 : i32, i32
  }
  func.func @transform_10(%arg0: i32) -> (i32, i32) {
    %c0_i32 = arith.constant 0 : i32
    %c0_i32_0 = arith.constant 0 : i32
    %c0_i32_1 = arith.constant 0 : i32
    return %c0_i32, %c0_i32_0 : i32, i32
  }
  func.func @transform_11(%arg0: i32) -> (i32, i32) {
    %c0_i32 = arith.constant 0 : i32
    %c0_i32_0 = arith.constant 0 : i32
    %c0_i32_1 = arith.constant 0 : i32
    return %c0_i32, %c0_i32_0 : i32, i32
  }
  func.func @transform_12(%arg0: i32) -> (i32, i32, i32) {
    %c0_i32 = arith.constant 0 : i32
    %c0_i32_0 = arith.constant 0 : i32
    %c0_i32_1 = arith.constant 0 : i32
    return %arg0, %c0_i32, %c0_i32_0 : i32, i32, i32
  }
}

</mosaic_0001>

<llo_original>
// kernel: tpu_custom_call.1
$region0: #{tpu_custom_call.1}
  #allocation0 [shape = 'u32[]', space=smem, size = 0x4, offset = 0x4, fixed_abs, tag = 'smem constant byte address 0x4 - core index']
  #allocation1 [shape = 'u32[72,128]{1,0:T(1,128)}', space=vmem, size = 0x9000, scoped, tag = 'internal scratch']
  %s0 = inlined_call_operand.vmem [shape: f32[2,8,32], index: 0, kind: input, shape index: {}]
  %s1 = inlined_call_operand.vmem [shape: f32[1,32], index: 1, kind: input, shape index: {}]
  %s2 = inlined_call_operand.vmem [shape: f32[1,32], index: 2, kind: input, shape index: {}]
  %s3 = inlined_call_operand.vmem [shape: f32[32,96], index: 3, kind: input, shape index: {}]
  %s4 = inlined_call_operand.vmem [shape: f32[4,8,32], index: 4, kind: input, shape index: {}]
  %s5 = inlined_call_operand.vmem [shape: f32[1,32], index: 5, kind: input, shape index: {}]
  %s6 = inlined_call_operand.vmem [shape: f32[1,32], index: 6, kind: input, shape index: {}]
  %s7 = inlined_call_operand.vmem [shape: f32[1,32], index: 7, kind: input, shape index: {}]
  %s8 = inlined_call_operand.vmem [shape: f32[32,128], index: 8, kind: input, shape index: {}]
  %s9 = inlined_call_operand.vmem [shape: f32[1,128], index: 9, kind: input, shape index: {}]
  %s10 = inlined_call_operand.vmem [shape: f32[128,32], index: 10, kind: input, shape index: {}]
  %s11 = inlined_call_operand.vmem [shape: f32[1,32], index: 11, kind: input, shape index: {}]
  %s12 = inlined_call_operand.hbm [shape: f32[2,8,32], index: 12, kind: output, shape index: {}]
  %s13 = sld [smem:[#allocation0]]
  $region81: #{tpu_custom_call.1} parent=0
    _
  %s15 = ssub.s32 1, %s13
  %s16 = scalar_select 0, %s15, %s13
  $region1: #{tpu_custom_call.1} parent=0
    #allocation2 [shape = 'u8[8192]{0}', space=vmem, size = 0x2000, scoped, tag = 'output window, operand 0']
    #allocation3 [shape = 's32[2]{0}', space=sflag, size = 0x8, scoped, tag = 'scoped memory for tpu_custom_call.1']
    %17 = vsyncpa [#allocation3], 0
    %s18 = scalar_lea.sflag [#allocation3], 1
    %19 = vsyncpa %s18, 0
    loop: start=0, step=1, limit=4
    $region2: #{tpu_custom_call.1} parent=1 // loop_pre_header
      _
    $region3: #{tpu_custom_call.1} parent=1 // loop_header
      %s21 = sphi 0, %s25
      %p22 = scmp.ge.s32.totalorder %s21, 4
      %s31 = sphi 0, %s33
      %s34 = sphi 0, %s31
      %s35 = sphi 0, %s34
      %s51 = sphi 0, %s35
      %s55 = sphi 0, %s55
      %s57 = sphi 0, %s55
      %s58 = sphi 0, %s57
      %s72 = sphi 0, %s58
      %s76 = sphi 0, %s76
      %s78 = sphi 0, %s76
      %s79 = sphi 0, %s78
      %s93 = sphi 0, %s79
      %s97 = sphi 0, %s97
      %s99 = sphi 0, %s97
      %s100 = sphi 0, %s99
      %s114 = sphi 0, %s100
      %s118 = sphi 0, %s118
      %s120 = sphi 0, %s118
      %s121 = sphi 0, %s120
      %s135 = sphi 0, %s121
      %s139 = sphi 0, %s139
      %s141 = sphi 0, %s139
      %s142 = sphi 0, %s141
      %s156 = sphi 0, %s142
      %s160 = sphi 0, %s160
      %s162 = sphi 0, %s160
      %s163 = sphi 0, %s162
      %s177 = sphi 0, %s163
      %s181 = sphi 0, %s181
      %s183 = sphi 0, %s181
      %s184 = sphi 0, %s183
      %s198 = sphi 0, %s184
      %s202 = sphi 0, %s202
      %s204 = sphi 0, %s202
      %s205 = sphi 0, %s204
      %s219 = sphi 0, %s205
      %s223 = sphi 0, %s223
      %s225 = sphi 0, %s223
      %s226 = sphi 0, %s225
      %s240 = sphi 0, %s226
      %s244 = sphi 0, %s244
      %s246 = sphi 0, %s244
      %s247 = sphi 0, %s246
      %s261 = sphi 0, %s247
      %s265 = sphi 0, %s265
      %s267 = sphi 0, %s265
      %s268 = sphi 0, %s267
      %s282 = sphi 0, %s268
      %s288 = sphi 0, %s290
      %s291 = sphi 0, %s288
      %s292 = sphi 0, %s291
      %s308 = sphi 0, %s292
    $region4: #{tpu_custom_call.1} parent=1 // loop_header_branch
      %24 = sbr.rel (%p22) target = $region8
    $region5: #{tpu_custom_call.1} parent=1 // loop_body
      %s26 = ssub.s32 %s21, 1
      %s27 = ssub.s32 %s21, 2
      %s28 = sadd.s32 %s21, 1
      %s29 = ssub.s32 %s21, %s28
      %p30 = scmp.eq.s32.totalorder %s29, 0
      %s32 = sadd.s32 %s31, 1
      %s33 = scalar_select %p30, %s31, %s32
      %p36 = pneg %p30
      %p37 = scmp.eq.s32.totalorder %s21, 1
      %p38 = por %p36, %p37
      %p39 = scmp.ne.s32.totalorder %s31, %s34
      %p40 = scmp.eq.s32.totalorder %s21, 0
      %p41 = por %p39, %p40
      %p42 = scmp.ne.s32.totalorder %s31, %s34
      %p43 = scmp.eq.s32.totalorder %s26, 1
      %p44 = por %p42, %p43
      %p45 = scmp.ne.s32.totalorder %s34, %s35
      %p46 = scmp.eq.s32.totalorder %s26, 0
      %p47 = por %p45, %p46
      %p48 = scmp.ne.s32.totalorder %s34, %s35
      %p49 = scmp.eq.s32.totalorder %s27, 1
      %p50 = por %p48, %p49
      %p52 = scmp.ne.s32.totalorder %s35, %s51
      %p53 = scmp.eq.s32.totalorder %s27, 0
      %p54 = por %p52, %p53
      %s56 = sadd.s32 %s55, 1
      %p59 = scmp.eq.s32.totalorder %s21, 1
      %p60 = scmp.ne.s32.totalorder %s55, %s57
      %p61 = scmp.eq.s32.totalorder %s21, 0
      %p62 = por %p60, %p61
      %p63 = scmp.ne.s32.totalorder %s55, %s57
      %p64 = scmp.eq.s32.totalorder %s26, 1
      %p65 = por %p63, %p64
      %p66 = scmp.ne.s32.totalorder %s57, %s58
      %p67 = scmp.eq.s32.totalorder %s26, 0
      %p68 = por %p66, %p67
      %p69 = scmp.ne.s32.totalorder %s57, %s58
      %p70 = scmp.eq.s32.totalorder %s27, 1
      %p71 = por %p69, %p70
      %p73 = scmp.ne.s32.totalorder %s58, %s72
      %p74 = scmp.eq.s32.totalorder %s27, 0
      %p75 = por %p73, %p74
      %s77 = sadd.s32 %s76, 1
      %p80 = scmp.eq.s32.totalorder %s21, 1
      %p81 = scmp.ne.s32.totalorder %s76, %s78
      %p82 = scmp.eq.s32.totalorder %s21, 0
      %p83 = por %p81, %p82
      %p84 = scmp.ne.s32.totalorder %s76, %s78
      %p85 = scmp.eq.s32.totalorder %s26, 1
      %p86 = por %p84, %p85
      %p87 = scmp.ne.s32.totalorder %s78, %s79
      %p88 = scmp.eq.s32.totalorder %s26, 0
      %p89 = por %p87, %p88
      %p90 = scmp.ne.s32.totalorder %s78, %s79
      %p91 = scmp.eq.s32.totalorder %s27, 1
      %p92 = por %p90, %p91
      %p94 = scmp.ne.s32.totalorder %s79, %s93
      %p95 = scmp.eq.s32.totalorder %s27, 0
      %p96 = por %p94, %p95
      %s98 = sadd.s32 %s97, 1
      %p101 = scmp.eq.s32.totalorder %s21, 1
      %p102 = scmp.ne.s32.totalorder %s97, %s99
      %p103 = scmp.eq.s32.totalorder %s21, 0
      %p104 = por %p102, %p103
      %p105 = scmp.ne.s32.totalorder %s97, %s99
      %p106 = scmp.eq.s32.totalorder %s26, 1
      %p107 = por %p105, %p106
      %p108 = scmp.ne.s32.totalorder %s99, %s100
      %p109 = scmp.eq.s32.totalorder %s26, 0
      %p110 = por %p108, %p109
      %p111 = scmp.ne.s32.totalorder %s99, %s100
      %p112 = scmp.eq.s32.totalorder %s27, 1
      %p113 = por %p111, %p112
      %p115 = scmp.ne.s32.totalorder %s100, %s114
      %p116 = scmp.eq.s32.totalorder %s27, 0
      %p117 = por %p115, %p116
      %s119 = sadd.s32 %s118, 1
      %p122 = scmp.eq.s32.totalorder %s21, 1
      %p123 = scmp.ne.s32.totalorder %s118, %s120
      %p124 = scmp.eq.s32.totalorder %s21, 0
      %p125 = por %p123, %p124
      %p126 = scmp.ne.s32.totalorder %s118, %s120
      %p127 = scmp.eq.s32.totalorder %s26, 1
      %p128 = por %p126, %p127
      %p129 = scmp.ne.s32.totalorder %s120, %s121
      %p130 = scmp.eq.s32.totalorder %s26, 0
      %p131 = por %p129, %p130
      %p132 = scmp.ne.s32.totalorder %s120, %s121
      %p133 = scmp.eq.s32.totalorder %s27, 1
      %p134 = por %p132, %p133
      %p136 = scmp.ne.s32.totalorder %s121, %s135
      %p137 = scmp.eq.s32.totalorder %s27, 0
      %p138 = por %p136, %p137
      %s140 = sadd.s32 %s139, 1
      %p143 = scmp.eq.s32.totalorder %s21, 1
      %p144 = scmp.ne.s32.totalorder %s139, %s141
      %p145 = scmp.eq.s32.totalorder %s21, 0
      %p146 = por %p144, %p145
      %p147 = scmp.ne.s32.totalorder %s139, %s141
      %p148 = scmp.eq.s32.totalorder %s26, 1
      %p149 = por %p147, %p148
      %p150 = scmp.ne.s32.totalorder %s141, %s142
      %p151 = scmp.eq.s32.totalorder %s26, 0
      %p152 = por %p150, %p151
      %p153 = scmp.ne.s32.totalorder %s141, %s142
      %p154 = scmp.eq.s32.totalorder %s27, 1
      %p155 = por %p153, %p154
      %p157 = scmp.ne.s32.totalorder %s142, %s156
      %p158 = scmp.eq.s32.totalorder %s27, 0
      %p159 = por %p157, %p158
      %s161 = sadd.s32 %s160, 1
      %p164 = scmp.eq.s32.totalorder %s21, 1
      %p165 = scmp.ne.s32.totalorder %s160, %s162
      %p166 = scmp.eq.s32.totalorder %s21, 0
      %p167 = por %p165, %p166
      %p168 = scmp.ne.s32.totalorder %s160, %s162
      %p169 = scmp.eq.s32.totalorder %s26, 1
      %p170 = por %p168, %p169
      %p171 = scmp.ne.s32.totalorder %s162, %s163
      %p172 = scmp.eq.s32.totalorder %s26, 0
      %p173 = por %p171, %p172
      %p174 = scmp.ne.s32.totalorder %s162, %s163
      %p175 = scmp.eq.s32.totalorder %s27, 1
      %p176 = por %p174, %p175
      %p178 = scmp.ne.s32.totalorder %s163, %s177
      %p179 = scmp.eq.s32.totalorder %s27, 0
      %p180 = por %p178, %p179
      %s182 = sadd.s32 %s181, 1
      %p185 = scmp.eq.s32.totalorder %s21, 1
      %p186 = scmp.ne.s32.totalorder %s181, %s183
      %p187 = scmp.eq.s32.totalorder %s21, 0
      %p188 = por %p186, %p187
      %p189 = scmp.ne.s32.totalorder %s181, %s183
      %p190 = scmp.eq.s32.totalorder %s26, 1
      %p191 = por %p189, %p190
      %p192 = scmp.ne.s32.totalorder %s183, %s184
      %p193 = scmp.eq.s32.totalorder %s26, 0
      %p194 = por %p192, %p193
      %p195 = scmp.ne.s32.totalorder %s183, %s184
      %p196 = scmp.eq.s32.totalorder %s27, 1
      %p197 = por %p195, %p196
      %p199 = scmp.ne.s32.totalorder %s184, %s198
      %p200 = scmp.eq.s32.totalorder %s27, 0
      %p201 = por %p199, %p200
      %s203 = sadd.s32 %s202, 1
      %p206 = scmp.eq.s32.totalorder %s21, 1
      %p207 = scmp.ne.s32.totalorder %s202, %s204
      %p208 = scmp.eq.s32.totalorder %s21, 0
      %p209 = por %p207, %p208
      %p210 = scmp.ne.s32.totalorder %s202, %s204
      %p211 = scmp.eq.s32.totalorder %s26, 1
      %p212 = por %p210, %p211
      %p213 = scmp.ne.s32.totalorder %s204, %s205
      %p214 = scmp.eq.s32.totalorder %s26, 0
      %p215 = por %p213, %p214
      %p216 = scmp.ne.s32.totalorder %s204, %s205
      %p217 = scmp.eq.s32.totalorder %s27, 1
      %p218 = por %p216, %p217
      %p220 = scmp.ne.s32.totalorder %s205, %s219
      %p221 = scmp.eq.s32.totalorder %s27, 0
      %p222 = por %p220, %p221
      %s224 = sadd.s32 %s223, 1
      %p227 = scmp.eq.s32.totalorder %s21, 1
      %p228 = scmp.ne.s32.totalorder %s223, %s225
      %p229 = scmp.eq.s32.totalorder %s21, 0
      %p230 = por %p228, %p229
      %p231 = scmp.ne.s32.totalorder %s223, %s225
      %p232 = scmp.eq.s32.totalorder %s26, 1
      %p233 = por %p231, %p232
      %p234 = scmp.ne.s32.totalorder %s225, %s226
      %p235 = scmp.eq.s32.totalorder %s26, 0
      %p236 = por %p234, %p235
      %p237 = scmp.ne.s32.totalorder %s225, %s226
      %p238 = scmp.eq.s32.totalorder %s27, 1
      %p239 = por %p237, %p238
      %p241 = scmp.ne.s32.totalorder %s226, %s240
      %p242 = scmp.eq.s32.totalorder %s27, 0
      %p243 = por %p241, %p242
      %s245 = sadd.s32 %s244, 1
      %p248 = scmp.eq.s32.totalorder %s21, 1
      %p249 = scmp.ne.s32.totalorder %s244, %s246
      %p250 = scmp.eq.s32.totalorder %s21, 0
      %p251 = por %p249, %p250
      %p252 = scmp.ne.s32.totalorder %s244, %s246
      %p253 = scmp.eq.s32.totalorder %s26, 1
      %p254 = por %p252, %p253
      %p255 = scmp.ne.s32.totalorder %s246, %s247
      %p256 = scmp.eq.s32.totalorder %s26, 0
      %p257 = por %p255, %p256
      %p258 = scmp.ne.s32.totalorder %s246, %s247
      %p259 = scmp.eq.s32.totalorder %s27, 1
      %p260 = por %p258, %p259
      %p262 = scmp.ne.s32.totalorder %s247, %s261
      %p263 = scmp.eq.s32.totalorder %s27, 0
      %p264 = por %p262, %p263
      %s266 = sadd.s32 %s265, 1
      %p269 = scmp.eq.s32.totalorder %s21, 1
      %p270 = scmp.ne.s32.totalorder %s265, %s267
      %p271 = scmp.eq.s32.totalorder %s21, 0
      %p272 = por %p270, %p271
      %p273 = scmp.ne.s32.totalorder %s265, %s267
      %p274 = scmp.eq.s32.totalorder %s26, 1
      %p275 = por %p273, %p274
      %p276 = scmp.ne.s32.totalorder %s267, %s268
      %p277 = scmp.eq.s32.totalorder %s26, 0
      %p278 = por %p276, %p277
      %p279 = scmp.ne.s32.totalorder %s267, %s268
      %p280 = scmp.eq.s32.totalorder %s27, 1
      %p281 = por %p279, %p280
      %p283 = scmp.ne.s32.totalorder %s268, %s282
      %p284 = scmp.eq.s32.totalorder %s27, 0
      %p285 = por %p283, %p284
      %s286 = ssub.s32 %s21, %s28
      %p287 = scmp.eq.s32.totalorder %s286, 0
      %s289 = sadd.s32 %s288, 1
      %s290 = scalar_select %p287, %s288, %s289
      %p293 = pneg %p287
      %p294 = scmp.eq.s32.totalorder %s21, 1
      %p295 = por %p293, %p294
      %p296 = scmp.ne.s32.totalorder %s288, %s291
      %p297 = scmp.eq.s32.totalorder %s21, 0
      %p298 = por %p296, %p297
      %p299 = scmp.ne.s32.totalorder %s288, %s291
      %p300 = scmp.eq.s32.totalorder %s26, 1
      %p301 = por %p299, %p300
      %p302 = scmp.ne.s32.totalorder %s291, %s292
      %p303 = scmp.eq.s32.totalorder %s26, 0
      %p304 = por %p302, %p303
      %p305 = scmp.ne.s32.totalorder %s291, %s292
      %p306 = scmp.eq.s32.totalorder %s27, 1
      %p307 = por %p305, %p306
      %p309 = scmp.ne.s32.totalorder %s292, %s308
      %p310 = scmp.eq.s32.totalorder %s27, 0
      %p311 = por %p309, %p310
      %p312 = scmp.le.s32.totalorder 1, %s21
      %p313 = scmp.lt.s32.totalorder %s21, 3
      %p314 = pnand %p312, %p313
      %p315 = pneg %p314
      // Predicated region
      $region9: #{tpu_custom_call.1} parent=5 // pred_check
        _
      $region10: #{tpu_custom_call.1} parent=5 // pred_check_branch
        %317 = sbr.rel (%p314) target = $region12
      $region11: #{tpu_custom_call.1} parent=5 // pred_region
        %s318 = ssub.s32 %s21, 1
        // Predicated region
        $region13: #{tpu_custom_call.1} parent=11 // pred_check
          %p319 = pneg %p68
        $region14: #{tpu_custom_call.1} parent=11 // pred_check_branch
          %321 = sbr.rel (%p319) target = $region16
        $region15: #{tpu_custom_call.1} parent=11 // pred_region
          _
        $region16: #{tpu_custom_call.1} parent=11 // pred_fallthru
          _
        // Predicated region
        $region17: #{tpu_custom_call.1} parent=11 // pred_check
          %p322 = pneg %p89
        $region18: #{tpu_custom_call.1} parent=11 // pred_check_branch
          %324 = sbr.rel (%p322) target = $region20
        $region19: #{tpu_custom_call.1} parent=11 // pred_region
          _
        $region20: #{tpu_custom_call.1} parent=11 // pred_fallthru
          _
        // Predicated region
        $region21: #{tpu_custom_call.1} parent=11 // pred_check
          %p325 = pneg %p110
        $region22: #{tpu_custom_call.1} parent=11 // pred_check_branch
          %327 = sbr.rel (%p325) target = $region24
        $region23: #{tpu_custom_call.1} parent=11 // pred_region
          _
        $region24: #{tpu_custom_call.1} parent=11 // pred_fallthru
          _
        // Predicated region
        $region25: #{tpu_custom_call.1} parent=11 // pred_check
          %p328 = pneg %p131
        $region26: #{tpu_custom_call.1} parent=11 // pred_check_branch
          %330 = sbr.rel (%p328) target = $region28
        $region27: #{tpu_custom_call.1} parent=11 // pred_region
          _
        $region28: #{tpu_custom_call.1} parent=11 // pred_fallthru
          _
        // Predicated region
        $region29: #{tpu_custom_call.1} parent=11 // pred_check
          %p331 = pneg %p152
        $region30: #{tpu_custom_call.1} parent=11 // pred_check_branch
          %333 = sbr.rel (%p331) target = $region32
        $region31: #{tpu_custom_call.1} parent=11 // pred_region
          _
        $region32: #{tpu_custom_call.1} parent=11 // pred_fallthru
          _
        // Predicated region
        $region33: #{tpu_custom_call.1} parent=11 // pred_check
          %p334 = pneg %p173
        $region34: #{tpu_custom_call.1} parent=11 // pred_check_branch
          %336 = sbr.rel (%p334) target = $region36
        $region35: #{tpu_custom_call.1} parent=11 // pred_region
          _
        $region36: #{tpu_custom_call.1} parent=11 // pred_fallthru
          _
        // Predicated region
        $region37: #{tpu_custom_call.1} parent=11 // pred_check
          %p337 = pneg %p194
        $region38: #{tpu_custom_call.1} parent=11 // pred_check_branch
          %339 = sbr.rel (%p337) target = $region40
        $region39: #{tpu_custom_call.1} parent=11 // pred_region
          _
        $region40: #{tpu_custom_call.1} parent=11 // pred_fallthru
          _
        // Predicated region
        $region41: #{tpu_custom_call.1} parent=11 // pred_check
          %p340 = pneg %p215
        $region42: #{tpu_custom_call.1} parent=11 // pred_check_branch
          %342 = sbr.rel (%p340) target = $region44
        $region43: #{tpu_custom_call.1} parent=11 // pred_region
          _
        $region44: #{tpu_custom_call.1} parent=11 // pred_fallthru
          _
        // Predicated region
        $region45: #{tpu_custom_call.1} parent=11 // pred_check
          %p343 = pneg %p236
        $region46: #{tpu_custom_call.1} parent=11 // pred_check_branch
          %345 = sbr.rel (%p343) target = $region48
        $region47: #{tpu_custom_call.1} parent=11 // pred_region
          _
        $region48: #{tpu_custom_call.1} parent=11 // pred_fallthru
          _
        // Predicated region
        $region49: #{tpu_custom_call.1} parent=11 // pred_check
          %p346 = pneg %p257
        $region50: #{tpu_custom_call.1} parent=11 // pred_check_branch
          %348 = sbr.rel (%p346) target = $region52
        $region51: #{tpu_custom_call.1} parent=11 // pred_region
          _
        $region52: #{tpu_custom_call.1} parent=11 // pred_fallthru
          _
        // Predicated region
        $region53: #{tpu_custom_call.1} parent=11 // pred_check
          %p349 = pneg %p278
        $region54: #{tpu_custom_call.1} parent=11 // pred_check_branch
          %351 = sbr.rel (%p349) target = $region56
        $region55: #{tpu_custom_call.1} parent=11 // pred_region
          _
        $region56: #{tpu_custom_call.1} parent=11 // pred_fallthru
          _
      $region12: #{tpu_custom_call.1} parent=5 // pred_fallthru
        _
      %p352 = scmp.lt.s32.totalorder %s21, 2
      // Predicated region
      $region57: #{tpu_custom_call.1} parent=5 // pred_check
        %p353 = pneg %p352
      $region58: #{tpu_custom_call.1} parent=5 // pred_check_branch
        %355 = sbr.rel (%p353) target = $region60
      $region59: #{tpu_custom_call.1} parent=5 // pred_region
        // Predicated region
        $region61: #{tpu_custom_call.1} parent=59 // pred_check
          %p356 = pneg %p41
        $region62: #{tpu_custom_call.1} parent=59 // pred_check_branch
          %358 = sbr.rel (%p356) target = $region64
        $region63: #{tpu_custom_call.1} parent=59 // pred_region
          %p359 = scmp.lt.s32.totalorder %s21, 1
          %s360 = scalar_select %p359, %s21, 1
          %s361 = smul.addr %s360, 8
          %s362 = scalar_lea.vmem %s0, %s361
        $region64: #{tpu_custom_call.1} parent=59 // pred_fallthru
          _
      $region60: #{tpu_custom_call.1} parent=5 // pred_fallthru
        _
      %p363 = scmp.le.s32.totalorder 1, %s21
      %p364 = scmp.lt.s32.totalorder %s21, 3
      %p365 = pnand %p363, %p364
      %p366 = pneg %p365
      // Predicated region
      $region65: #{tpu_custom_call.1} parent=5 // pred_check
        _
      $region66: #{tpu_custom_call.1} parent=5 // pred_check_branch
        %368 = sbr.rel (%p365) target = $region68
      $region67: #{tpu_custom_call.1} parent=5 // pred_region
        %s369 = ssub.s32 %s21, 1
        %p370 = scmp.lt.s32.totalorder %s26, 1
        %s371 = scalar_select %p370, %s26, 1
        %s372 = smul.addr %s371, 8
        %s373 = scalar_lea.vmem %s0, %s372
        %p374 = pneg %p47
        %p375 = pneg %p44
        %p376 = pneg %p68
        %p377 = pneg %p65
        %p378 = pneg %p89
        %p379 = pneg %p86
        %p380 = pneg %p110
        %p381 = pneg %p107
        %p382 = pneg %p131
        %p383 = pneg %p128
        %p384 = pneg %p152
        %p385 = pneg %p149
        %p386 = pneg %p173
        %p387 = pneg %p170
        %p388 = pneg %p194
        %p389 = pneg %p191
        %p390 = pneg %p215
        %p391 = pneg %p212
        %p392 = pneg %p236
        %p393 = pneg %p233
        %p394 = pneg %p257
        %p395 = pneg %p254
        %p396 = pneg %p278
        %p397 = pneg %p275
        %p398 = pneg %p304
        %p399 = pneg %p301
        %s400 = sand.u32 %s291, 1
        %s401 = scalar_lea.sflag [#allocation3], %s400
        %s402 = sand.u32 %s291, 1
        %s403 = smul.addr %s402, 8
        %s404 = scalar_lea.vmem [#allocation2], %s403
        %p405 = scmp.lt.s32.totalorder %s26, 1
        %s406 = scalar_select %p405, %s26, 1
        %s407 = smul.addr %s406, 8
        %s408 = scalar_lea.vmem %s0, %s407
        %v409 = vld [vmem:[%s408] sm:$0xff]
        %v410 = vld [vmem:[%s1] sm:$0x1]
        %v411 = vld [vmem:[%s2] sm:$0x1]
        %vm412 = vcmask 261120
        %v413 = vsel %vm412, %v409, 0.0
        %414 = vadd.xlane.f32.xlu0 %v413
        %v415 = vpop.xlane.xlu0 %414
        %v416 = vrcp.pop 32.0
        %v417 = vmul.f32 32.0, %v416
        %v418 = vsub.f32 1.0, %v417
        %v419 = vmul.f32 %v416, %v418
        %v420 = vadd.f32 %v416, %v419
        %vm421 = vweird.f32 %v416
        %v422 = vsel %vm421, %v416, %v420
        %v423 = vmul.f32 %v415, %v422
        %v424 = vsub.f32 %v409, %v423
        %v425 = vmul.f32 %v424, %v424
        %v426 = vsel %vm412, %v425, 0.0
        %427 = vadd.xlane.f32.xlu0 %v426
        %v428 = vpop.xlane.xlu0 %427
        %v429 = vmul.f32 %v428, %v422
        %v430 = vadd.f32 %v429, 1e-05
        %v431 = vrsqrt.pop %v430
        %v432 = vmul.f32 %v431, %v430
        %v433 = vmul.f32 %v432, %v431
        %v434 = vmul.f32 0.5, %v433
        %v435 = vsub.f32 1.5, %v434
        %v436 = vmul.f32 %v431, %v435
        %vm437 = vweird.f32 %v430
        %vm438 = vweird.f32 %v431
        %vm439 = vmor %vm437, %vm438
        %v440 = vsel %vm439, %v431, %v436
        %v441 = vmul.f32 %v424, %v440
        %v443 = vperm.slane %v410, 0
        %v445 = vmul.f32 %v441, %v443
        %v447 = vperm.slane %v411, 0
        %v449 = vadd.f32 %v445, %v447
        %v450 = vld [vmem:[%s3] sm:$0xff]
        %v451 = vld [vmem:[%s3 + $0x8] sm:$0xff]
        %v452 = vld [vmem:[%s3 + $0x10] sm:$0xff]
        %v453 = vld [vmem:[%s3 + $0x18] sm:$0xff]
        %v455 = vsel %vm412, %v449, 0
        %457 = vmatpush.msra.mxu0 0.0
        %458 = vmatpush.msra.mxu0 0.0
        %459 = vmatpush.msra.mxu0 0.0
        %460 = vmatpush.msra.mxu0 0.0
        %461 = vmatpush.msra.mxu0 0.0
        %462 = vmatpush.msra.mxu0 0.0
        %463 = vmatpush.msra.mxu0 0.0
        %464 = vmatpush.msra.mxu0 0.0
        %465 = vmatpush.msra.mxu0 0.0
        %466 = vmatpush.msra.mxu0 0.0
        %467 = vmatpush.msra.mxu0 0.0
        %468 = vmatpush.msra.mxu0 0.0
        %469 = vmatpush.msra.mxu0 %v453
        %470 = vmatpush.msra.mxu0 %v452
        %471 = vmatpush.msra.mxu0 %v451
        %472 = vmatpush.msra.mxu0 %v450
        %473 = vmatmul.f32.gmra.mxu0 %v455
        %v474 = vpop.f32.mrf.mxu0
        %v475 = vadd.f32 0.0, %v474
        %476 = vdwg.mxu0
        %v477 = vlaneseq
        %v478 = vshrl.u32 %v477, 7
        %v479 = vlaneseq
        %v480 = vand.u32 %v479, 127
        %vm481 = vcmp.le.s32.totalorder %v480, %v478
        %483 = vrot.lane.b32.xlu0 %v475, 96
        %v484 = vpop.permute.xlu0 %483
        %vm485 = vcmask 64512
        %v486 = vsel %vm485, %v475, 0
        %v488 = vsel %vm485, %v484, 0
        %490 = vmatpush.xpose.msra.mxu0 0.0
        %491 = vmatpush.xpose.msra.mxu0 0.0
        %492 = vmatpush.xpose.msra.mxu0 0.0
        %493 = vmatpush.xpose.msra.mxu0 0.0
        %494 = vmatpush.xpose.msra.mxu0 0.0
        %495 = vmatpush.xpose.msra.mxu0 0.0
        %496 = vmatpush.xpose.msra.mxu0 0.0
        %497 = vmatpush.xpose.msra.mxu0 0.0
        %498 = vmatpush.xpose.msra.mxu0 0.0
        %499 = vmatpush.xpose.msra.mxu0 0.0
        %500 = vmatpush.xpose.msra.mxu0 0.0
        %501 = vmatpush.xpose.msra.mxu0 0.0
        %502 = vmatpush.xpose.msra.mxu0 0.0
        %503 = vmatpush.xpose.msra.mxu0 0.0
        %504 = vmatpush.xpose.msra.mxu0 0.0
        %505 = vmatpush.xpose.msra.mxu0 %v488
        %506 = vmatmul.f32.gmra.mxu0 %v486
        %v507 = vpop.f32.mrf.mxu0
        %v508 = vadd.f32 0.0, %v507
        %509 = vdwg.mxu0
        %v510 = vsel %vm481, %v508, -1e+30
        %v511 = vsel %vm485, %v510, -inf
        %512 = vmax.xlane.f32.xlu0 %v511
        %v513 = vpop.xlane.xlu0 %512
        %v514 = vsub.f32 %v510, %v513
        %v515 = vmul.f32 %v514, 1.442695
        %v516 = vpow.pop %v515
        %v517 = vsel %vm485, %v516, 0.0
        %518 = vadd.xlane.f32.xlu0 %v517
        %v519 = vpop.xlane.xlu0 %518
        %v520 = vrcp.pop %v519
        %v521 = vmul.f32 %v516, %v520
        %522 = vrot.lane.b32.xlu0 %v475, 64
        %v523 = vpop.permute.xlu0 %522
        %v526 = vsel %vm485, %v521, 0
        %528 = vmatpush.msra.mxu0 0.0
        %529 = vmatpush.msra.mxu0 0.0
        %530 = vmatpush.msra.mxu0 0.0
        %531 = vmatpush.msra.mxu0 0.0
        %532 = vmatpush.msra.mxu0 0.0
        %533 = vmatpush.msra.mxu0 0.0
        %534 = vmatpush.msra.mxu0 0.0
        %535 = vmatpush.msra.mxu0 0.0
        %536 = vmatpush.msra.mxu0 0.0
        %537 = vmatpush.msra.mxu0 0.0
        %538 = vmatpush.msra.mxu0 0.0
        %539 = vmatpush.msra.mxu0 0.0
        %540 = vmatpush.msra.mxu0 0.0
        %541 = vmatpush.msra.mxu0 0.0
        %542 = vmatpush.msra.mxu0 0.0
        %543 = vmatpush.msra.mxu0 %v523
        %544 = vmatmul.f32.gmra.mxu0 %v526
        %v545 = vpop.f32.mrf.mxu0
        %v546 = vadd.f32 0.0, %v545
        %547 = vdwg.mxu0
        %v548 = vld [vmem:[%s4] sm:$0xff]
        %549 = vrot.lane.b32.xlu0 %v475, 120
        %v550 = vpop.permute.xlu0 %549
        %551 = vrot.lane.b32.xlu0 %v475, 88
        %v552 = vpop.permute.xlu0 %551
        %v553 = vsel %vm485, %v550, 0
        %v555 = vsel %vm485, %v552, 0
        %557 = vmatpush.xpose.msra.mxu0 0.0
        %558 = vmatpush.xpose.msra.mxu0 0.0
        %559 = vmatpush.xpose.msra.mxu0 0.0
        %560 = vmatpush.xpose.msra.mxu0 0.0
        %561 = vmatpush.xpose.msra.mxu0 0.0
        %562 = vmatpush.xpose.msra.mxu0 0.0
        %563 = vmatpush.xpose.msra.mxu0 0.0
        %564 = vmatpush.xpose.msra.mxu0 0.0
        %565 = vmatpush.xpose.msra.mxu0 0.0
        %566 = vmatpush.xpose.msra.mxu0 0.0
        %567 = vmatpush.xpose.msra.mxu0 0.0
        %568 = vmatpush.xpose.msra.mxu0 0.0
        %569 = vmatpush.xpose.msra.mxu0 0.0
        %570 = vmatpush.xpose.msra.mxu0 0.0
        %571 = vmatpush.xpose.msra.mxu0 0.0
        %572 = vmatpush.xpose.msra.mxu0 %v555
        %573 = vmatmul.f32.gmra.mxu0 %v553
        %v574 = vpop.f32.mrf.mxu0
        %v575 = vadd.f32 0.0, %v574
        %576 = vdwg.mxu0
        %v577 = vsel %vm481, %v575, -1e+30
        %v578 = vsel %vm485, %v577, -inf
        %579 = vmax.xlane.f32.xlu0 %v578
        %v580 = vpop.xlane.xlu0 %579
        %v581 = vsub.f32 %v577, %v580
        %v582 = vmul.f32 %v581, 1.442695
        %v583 = vpow.pop %v582
        %v584 = vsel %vm485, %v583, 0.0
        %585 = vadd.xlane.f32.xlu0 %v584
        %v586 = vpop.xlane.xlu0 %585
        %v587 = vrcp.pop %v586
        %v588 = vmul.f32 %v583, %v587
        %589 = vrot.lane.b32.xlu0 %v475, 56
        %v590 = vpop.permute.xlu0 %589
        %v593 = vsel %vm485, %v588, 0
        %595 = vmatpush.msra.mxu0 0.0
        %596 = vmatpush.msra.mxu0 0.0
        %597 = vmatpush.msra.mxu0 0.0
        %598 = vmatpush.msra.mxu0 0.0
        %599 = vmatpush.msra.mxu0 0.0
        %600 = vmatpush.msra.mxu0 0.0
        %601 = vmatpush.msra.mxu0 0.0
        %602 = vmatpush.msra.mxu0 0.0
        %603 = vmatpush.msra.mxu0 0.0
        %604 = vmatpush.msra.mxu0 0.0
        %605 = vmatpush.msra.mxu0 0.0
        %606 = vmatpush.msra.mxu0 0.0
        %607 = vmatpush.msra.mxu0 0.0
        %608 = vmatpush.msra.mxu0 0.0
        %609 = vmatpush.msra.mxu0 0.0
        %610 = vmatpush.msra.mxu0 %v590
        %611 = vmatmul.f32.gmra.mxu0 %v593
        %v612 = vpop.f32.mrf.mxu0
        %v613 = vadd.f32 0.0, %v612
        %614 = vdwg.mxu0
        %s615 = scalar_lea.vmem %s4, 8
        %v616 = vld [vmem:[%s615] sm:$0xff]
        %v618 = vsel %vm485, %v613, 0
        %620 = vmatpush.msra.mxu0 0.0
        %621 = vmatpush.msra.mxu0 0.0
        %622 = vmatpush.msra.mxu0 0.0
        %623 = vmatpush.msra.mxu0 0.0
        %624 = vmatpush.msra.mxu0 0.0
        %625 = vmatpush.msra.mxu0 0.0
        %626 = vmatpush.msra.mxu0 0.0
        %627 = vmatpush.msra.mxu0 0.0
        %628 = vmatpush.msra.mxu0 0.0
        %629 = vmatpush.msra.mxu0 0.0
        %630 = vmatpush.msra.mxu0 0.0
        %631 = vmatpush.msra.mxu0 0.0
        %632 = vmatpush.msra.mxu0 0.0
        %633 = vmatpush.msra.mxu0 0.0
        %634 = vmatpush.msra.mxu0 0.0
        %635 = vmatpush.msra.mxu0 %v616
        %636 = vmatmul.f32.gmra.mxu0 %v618
        %v637 = vpop.f32.mrf.mxu0
        %v638 = vadd.f32 0.0, %v637
        %639 = vdwg.mxu0
        %v641 = vsel %vm485, %v546, 0
        %643 = vmatpush.msra.mxu0 0.0
        %644 = vmatpush.msra.mxu0 0.0
        %645 = vmatpush.msra.mxu0 0.0
        %646 = vmatpush.msra.mxu0 0.0
        %647 = vmatpush.msra.mxu0 0.0
        %648 = vmatpush.msra.mxu0 0.0
        %649 = vmatpush.msra.mxu0 0.0
        %650 = vmatpush.msra.mxu0 0.0
        %651 = vmatpush.msra.mxu0 0.0
        %652 = vmatpush.msra.mxu0 0.0
        %653 = vmatpush.msra.mxu0 0.0
        %654 = vmatpush.msra.mxu0 0.0
        %655 = vmatpush.msra.mxu0 0.0
        %656 = vmatpush.msra.mxu0 0.0
        %657 = vmatpush.msra.mxu0 0.0
        %658 = vmatpush.msra.mxu0 %v548
        %659 = vmatmul.f32.gmra.mxu0 %v641
        %v660 = vpop.f32.mrf.mxu0
        %v661 = vadd.f32 %v638, %v660
        %662 = vdwg.mxu0
        %663 = vrot.lane.b32.xlu0 %v475, 112
        %v664 = vpop.permute.xlu0 %663
        %665 = vrot.lane.b32.xlu0 %v475, 80
        %v666 = vpop.permute.xlu0 %665
        %v667 = vsel %vm485, %v664, 0
        %v669 = vsel %vm485, %v666, 0
        %671 = vmatpush.xpose.msra.mxu0 0.0
        %672 = vmatpush.xpose.msra.mxu0 0.0
        %673 = vmatpush.xpose.msra.mxu0 0.0
        %674 = vmatpush.xpose.msra.mxu0 0.0
        %675 = vmatpush.xpose.msra.mxu0 0.0
        %676 = vmatpush.xpose.msra.mxu0 0.0
        %677 = vmatpush.xpose.msra.mxu0 0.0
        %678 = vmatpush.xpose.msra.mxu0 0.0
        %679 = vmatpush.xpose.msra.mxu0 0.0
        %680 = vmatpush.xpose.msra.mxu0 0.0
        %681 = vmatpush.xpose.msra.mxu0 0.0
        %682 = vmatpush.xpose.msra.mxu0 0.0
        %683 = vmatpush.xpose.msra.mxu0 0.0
        %684 = vmatpush.xpose.msra.mxu0 0.0
        %685 = vmatpush.xpose.msra.mxu0 0.0
        %686 = vmatpush.xpose.msra.mxu0 %v669
        %687 = vmatmul.f32.gmra.mxu0 %v667
        %v688 = vpop.f32.mrf.mxu0
        %v689 = vadd.f32 0.0, %v688
        %690 = vdwg.mxu0
        %v691 = vsel %vm481, %v689, -1e+30
        %v692 = vsel %vm485, %v691, -inf
        %693 = vmax.xlane.f32.xlu0 %v692
        %v694 = vpop.xlane.xlu0 %693
        %v695 = vsub.f32 %v691, %v694
        %v696 = vmul.f32 %v695, 1.442695
        %v697 = vpow.pop %v696
        %v698 = vsel %vm485, %v697, 0.0
        %699 = vadd.xlane.f32.xlu0 %v698
        %v700 = vpop.xlane.xlu0 %699
        %v701 = vrcp.pop %v700
        %v702 = vmul.f32 %v697, %v701
        %703 = vrot.lane.b32.xlu0 %v475, 48
        %v704 = vpop.permute.xlu0 %703
        %v707 = vsel %vm485, %v702, 0
        %709 = vmatpush.msra.mxu0 0.0
        %710 = vmatpush.msra.mxu0 0.0
        %711 = vmatpush.msra.mxu0 0.0
        %712 = vmatpush.msra.mxu0 0.0
        %713 = vmatpush.msra.mxu0 0.0
        %714 = vmatpush.msra.mxu0 0.0
        %715 = vmatpush.msra.mxu0 0.0
        %716 = vmatpush.msra.mxu0 0.0
        %717 = vmatpush.msra.mxu0 0.0
        %718 = vmatpush.msra.mxu0 0.0
        %719 = vmatpush.msra.mxu0 0.0
        %720 = vmatpush.msra.mxu0 0.0
        %721 = vmatpush.msra.mxu0 0.0
        %722 = vmatpush.msra.mxu0 0.0
        %723 = vmatpush.msra.mxu0 0.0
        %724 = vmatpush.msra.mxu0 %v704
        %725 = vmatmul.f32.gmra.mxu0 %v707
        %v726 = vpop.f32.mrf.mxu0
        %v727 = vadd.f32 0.0, %v726
        %728 = vdwg.mxu0
        %s729 = scalar_lea.vmem %s4, 16
        %v730 = vld [vmem:[%s729] sm:$0xff]
        %v732 = vsel %vm485, %v727, 0
        %734 = vmatpush.msra.mxu0 0.0
        %735 = vmatpush.msra.mxu0 0.0
        %736 = vmatpush.msra.mxu0 0.0
        %737 = vmatpush.msra.mxu0 0.0
        %738 = vmatpush.msra.mxu0 0.0
        %739 = vmatpush.msra.mxu0 0.0
        %740 = vmatpush.msra.mxu0 0.0
        %741 = vmatpush.msra.mxu0 0.0
        %742 = vmatpush.msra.mxu0 0.0
        %743 = vmatpush.msra.mxu0 0.0
        %744 = vmatpush.msra.mxu0 0.0
        %745 = vmatpush.msra.mxu0 0.0
        %746 = vmatpush.msra.mxu0 0.0
        %747 = vmatpush.msra.mxu0 0.0
        %748 = vmatpush.msra.mxu0 0.0
        %749 = vmatpush.msra.mxu0 %v730
        %750 = vmatmul.f32.gmra.mxu0 %v732
        %v751 = vpop.f32.mrf.mxu0
        %v752 = vadd.f32 0.0, %v751
        %753 = vdwg.mxu0
        %v754 = vadd.f32 %v661, %v752
        %755 = vrot.lane.b32.xlu0 %v475, 104
        %v756 = vpop.permute.xlu0 %755
        %757 = vrot.lane.b32.xlu0 %v475, 72
        %v758 = vpop.permute.xlu0 %757
        %v759 = vsel %vm485, %v756, 0
        %v761 = vsel %vm485, %v758, 0
        %763 = vmatpush.xpose.msra.mxu0 0.0
        %764 = vmatpush.xpose.msra.mxu0 0.0
        %765 = vmatpush.xpose.msra.mxu0 0.0
        %766 = vmatpush.xpose.msra.mxu0 0.0
        %767 = vmatpush.xpose.msra.mxu0 0.0
        %768 = vmatpush.xpose.msra.mxu0 0.0
        %769 = vmatpush.xpose.msra.mxu0 0.0
        %770 = vmatpush.xpose.msra.mxu0 0.0
        %771 = vmatpush.xpose.msra.mxu0 0.0
        %772 = vmatpush.xpose.msra.mxu0 0.0
        %773 = vmatpush.xpose.msra.mxu0 0.0
        %774 = vmatpush.xpose.msra.mxu0 0.0
        %775 = vmatpush.xpose.msra.mxu0 0.0
        %776 = vmatpush.xpose.msra.mxu0 0.0
        %777 = vmatpush.xpose.msra.mxu0 0.0
        %778 = vmatpush.xpose.msra.mxu0 %v761
        %779 = vmatmul.f32.gmra.mxu0 %v759
        %v780 = vpop.f32.mrf.mxu0
        %v781 = vadd.f32 0.0, %v780
        %782 = vdwg.mxu0
        %v783 = vsel %vm481, %v781, -1e+30
        %v784 = vsel %vm485, %v783, -inf
        %785 = vmax.xlane.f32.xlu0 %v784
        %v786 = vpop.xlane.xlu0 %785
        %v787 = vsub.f32 %v783, %v786
        %v788 = vmul.f32 %v787, 1.442695
        %v789 = vpow.pop %v788
        %v790 = vsel %vm485, %v789, 0.0
        %791 = vadd.xlane.f32.xlu0 %v790
        %v792 = vpop.xlane.xlu0 %791
        %v793 = vrcp.pop %v792
        %v794 = vmul.f32 %v789, %v793
        %795 = vrot.lane.b32.xlu0 %v475, 40
        %v796 = vpop.permute.xlu0 %795
        %v799 = vsel %vm485, %v794, 0
        %801 = vmatpush.msra.mxu0 0.0
        %802 = vmatpush.msra.mxu0 0.0
        %803 = vmatpush.msra.mxu0 0.0
        %804 = vmatpush.msra.mxu0 0.0
        %805 = vmatpush.msra.mxu0 0.0
        %806 = vmatpush.msra.mxu0 0.0
        %807 = vmatpush.msra.mxu0 0.0
        %808 = vmatpush.msra.mxu0 0.0
        %809 = vmatpush.msra.mxu0 0.0
        %810 = vmatpush.msra.mxu0 0.0
        %811 = vmatpush.msra.mxu0 0.0
        %812 = vmatpush.msra.mxu0 0.0
        %813 = vmatpush.msra.mxu0 0.0
        %814 = vmatpush.msra.mxu0 0.0
        %815 = vmatpush.msra.mxu0 0.0
        %816 = vmatpush.msra.mxu0 %v796
        %817 = vmatmul.f32.gmra.mxu0 %v799
        %v818 = vpop.f32.mrf.mxu0
        %v819 = vadd.f32 0.0, %v818
        %820 = vdwg.mxu0
        %s821 = scalar_lea.vmem %s4, 24
        %v822 = vld [vmem:[%s821] sm:$0xff]
        %v824 = vsel %vm485, %v819, 0
        %826 = vmatpush.msra.mxu0 0.0
        %827 = vmatpush.msra.mxu0 0.0
        %828 = vmatpush.msra.mxu0 0.0
        %829 = vmatpush.msra.mxu0 0.0
        %830 = vmatpush.msra.mxu0 0.0
        %831 = vmatpush.msra.mxu0 0.0
        %832 = vmatpush.msra.mxu0 0.0
        %833 = vmatpush.msra.mxu0 0.0
        %834 = vmatpush.msra.mxu0 0.0
        %835 = vmatpush.msra.mxu0 0.0
        %836 = vmatpush.msra.mxu0 0.0
        %837 = vmatpush.msra.mxu0 0.0
        %838 = vmatpush.msra.mxu0 0.0
        %839 = vmatpush.msra.mxu0 0.0
        %840 = vmatpush.msra.mxu0 0.0
        %841 = vmatpush.msra.mxu0 %v822
        %842 = vmatmul.f32.gmra.mxu0 %v824
        %v843 = vpop.f32.mrf.mxu0
        %v844 = vadd.f32 0.0, %v843
        %845 = vdwg.mxu0
        %v846 = vadd.f32 %v754, %v844
        %v847 = vadd.f32 %v409, %v846
        %v848 = vld [vmem:[%s5] sm:$0x1]
        %v850 = vperm.slane %v848, 0
        %v852 = vadd.f32 %v847, %v850
        %v853 = vld [vmem:[%s6] sm:$0x1]
        %v854 = vld [vmem:[%s7] sm:$0x1]
        %v855 = vsel %vm412, %v852, 0.0
        %856 = vadd.xlane.f32.xlu0 %v855
        %v857 = vpop.xlane.xlu0 %856
        %v858 = vmul.f32 %v857, %v422
        %v859 = vsub.f32 %v852, %v858
        %v860 = vmul.f32 %v859, %v859
        %v861 = vsel %vm412, %v860, 0.0
        %862 = vadd.xlane.f32.xlu0 %v861
        %v863 = vpop.xlane.xlu0 %862
        %v864 = vmul.f32 %v863, %v422
        %v865 = vadd.f32 %v864, 1e-05
        %v866 = vrsqrt.pop %v865
        %v867 = vmul.f32 %v866, %v865
        %v868 = vmul.f32 %v867, %v866
        %v869 = vmul.f32 0.5, %v868
        %v870 = vsub.f32 1.5, %v869
        %v871 = vmul.f32 %v866, %v870
        %vm872 = vweird.f32 %v865
        %vm873 = vweird.f32 %v866
        %vm874 = vmor %vm872, %vm873
        %v875 = vsel %vm874, %v866, %v871
        %v876 = vmul.f32 %v859, %v875
        %v878 = vperm.slane %v853, 0
        %v880 = vmul.f32 %v876, %v878
        %v882 = vperm.slane %v854, 0
        %v884 = vadd.f32 %v880, %v882
        %v885 = vld [vmem:[%s8] sm:$0xff]
        %v886 = vld [vmem:[%s8 + $0x8] sm:$0xff]
        %v887 = vld [vmem:[%s8 + $0x10] sm:$0xff]
        %v888 = vld [vmem:[%s8 + $0x18] sm:$0xff]
        %v889 = vld [vmem:[%s9] sm:$0x1]
        %v891 = vperm.slane %v889, 0
        %v894 = vsel %vm412, %v884, 0
        %896 = vmatpush.msra.mxu0 0.0
        %897 = vmatpush.msra.mxu0 0.0
        %898 = vmatpush.msra.mxu0 0.0
        %899 = vmatpush.msra.mxu0 0.0
        %900 = vmatpush.msra.mxu0 0.0
        %901 = vmatpush.msra.mxu0 0.0
        %902 = vmatpush.msra.mxu0 0.0
        %903 = vmatpush.msra.mxu0 0.0
        %904 = vmatpush.msra.mxu0 0.0
        %905 = vmatpush.msra.mxu0 0.0
        %906 = vmatpush.msra.mxu0 0.0
        %907 = vmatpush.msra.mxu0 0.0
        %908 = vmatpush.msra.mxu0 %v888
        %909 = vmatpush.msra.mxu0 %v887
        %910 = vmatpush.msra.mxu0 %v886
        %911 = vmatpush.msra.mxu0 %v885
        %912 = vmatmul.f32.gmra.mxu0 %v894
        %v913 = vpop.f32.mrf.mxu0
        %v914 = vadd.f32 %v891, %v913
        %915 = vdwg.mxu0
        %v916 = vmax.f32 %v914, 0.0
        %v917 = vld [vmem:[%s10] sm:$0xff]
        %v918 = vld [vmem:[%s10 + $0x8] sm:$0xff]
        %v919 = vld [vmem:[%s10 + $0x10] sm:$0xff]
        %v920 = vld [vmem:[%s10 + $0x18] sm:$0xff]
        %v921 = vld [vmem:[%s10 + $0x20] sm:$0xff]
        %v922 = vld [vmem:[%s10 + $0x28] sm:$0xff]
        %v923 = vld [vmem:[%s10 + $0x30] sm:$0xff]
        %v924 = vld [vmem:[%s10 + $0x38] sm:$0xff]
        %v925 = vld [vmem:[%s10 + $0x40] sm:$0xff]
        %v926 = vld [vmem:[%s10 + $0x48] sm:$0xff]
        %v927 = vld [vmem:[%s10 + $0x50] sm:$0xff]
        %v928 = vld [vmem:[%s10 + $0x58] sm:$0xff]
        %v929 = vld [vmem:[%s10 + $0x60] sm:$0xff]
        %v930 = vld [vmem:[%s10 + $0x68] sm:$0xff]
        %v931 = vld [vmem:[%s10 + $0x70] sm:$0xff]
        %v932 = vld [vmem:[%s10 + $0x78] sm:$0xff]
        %v933 = vld [vmem:[%s11] sm:$0x1]
        %v935 = vperm.slane %v933, 0
        %937 = vmatpush.msra.mxu0 %v932
        %938 = vmatpush.msra.mxu0 %v931
        %939 = vmatpush.msra.mxu0 %v930
        %940 = vmatpush.msra.mxu0 %v929
        %941 = vmatpush.msra.mxu0 %v928
        %942 = vmatpush.msra.mxu0 %v927
        %943 = vmatpush.msra.mxu0 %v926
        %944 = vmatpush.msra.mxu0 %v925
        %945 = vmatpush.msra.mxu0 %v924
        %946 = vmatpush.msra.mxu0 %v923
        %947 = vmatpush.msra.mxu0 %v922
        %948 = vmatpush.msra.mxu0 %v921
        %949 = vmatpush.msra.mxu0 %v920
        %950 = vmatpush.msra.mxu0 %v919
        %951 = vmatpush.msra.mxu0 %v918
        %952 = vmatpush.msra.mxu0 %v917
        %953 = vmatmul.f32.gmra.mxu0 %v916
        %v954 = vpop.f32.mrf.mxu0
        %v955 = vadd.f32 %v935, %v954
        %956 = vdwg.mxu0
        %v957 = vadd.f32 %v852, %v955
        %958 = vst.msk [vmem:[%s404] sm:$0xff] %vm412, %v957
        %s959 = sand.u32 %s291, 1
        %s960 = scalar_lea.sflag [#allocation3], %s959
        %s961 = sand.u32 %s291, 1
        %s962 = smul.addr %s961, 8
        %s963 = scalar_lea.vmem [#allocation2], %s962
        // Predicated region
        $region69: #{tpu_custom_call.1} parent=67 // pred_check
          %p964 = pneg %p301
        $region70: #{tpu_custom_call.1} parent=67 // pred_check_branch
          %966 = sbr.rel (%p964) target = $region72
        $region71: #{tpu_custom_call.1} parent=67 // pred_region
          %968 = vsyncadd %s960, 0
          %s969 = smul.addr %s26, 8
          %s970 = scalar_lea.hbm %s12, %s969
          %s972 = sshll.u32 %s963, 4
          %s973 = int_to_ptr.vmem [resolvable:$true] %s972
          %s974 = sshll.u32 %s970, 4
          %s975 = int_to_ptr.hbm [resolvable:$true] %s974
          %977 = dma.vmem_to_hbm [thread:$0]  %s973, 128, %s975, %s960
        $region72: #{tpu_custom_call.1} parent=67 // pred_fallthru
          _
      $region68: #{tpu_custom_call.1} parent=5 // pred_fallthru
        _
      %p978 = scmp.le.s32.totalorder 2, %s21
      // Predicated region
      $region73: #{tpu_custom_call.1} parent=5 // pred_check
        %p979 = pneg %p978
      $region74: #{tpu_custom_call.1} parent=5 // pred_check_branch
        %981 = sbr.rel (%p979) target = $region76
      $region75: #{tpu_custom_call.1} parent=5 // pred_region
        %s982 = ssub.s32 %s21, 2
        // Predicated region
        $region77: #{tpu_custom_call.1} parent=75 // pred_check
          %p983 = pneg %p307
        $region78: #{tpu_custom_call.1} parent=75 // pred_check_branch
          %985 = sbr.rel (%p983) target = $region80
        $region79: #{tpu_custom_call.1} parent=75 // pred_region
          %s986 = sand.u32 %s292, 1
          %s987 = scalar_lea.sflag [#allocation3], %s986
          %s988 = sand.u32 %s292, 1
          %s989 = smul.addr %s988, 8
          %s990 = scalar_lea.vmem [#allocation2], %s989
          %992 = dma.done %s987, 128
        $region80: #{tpu_custom_call.1} parent=75 // pred_fallthru
          _
      $region76: #{tpu_custom_call.1} parent=5 // pred_fallthru
        _
    $region6: #{tpu_custom_call.1} parent=1 // loop_footer
      %s25 = sadd.s32 1, %s21
    $region7: #{tpu_custom_call.1} parent=1 // loop_footer_branch
      %20 = sbr.rel target = $region3
    $region8: #{tpu_custom_call.1} parent=1 // loop_exit
      _
    %993 = vsyncpa [#allocation3], 1
    %s994 = scalar_lea.sflag [#allocation3], 1
    %995 = vsyncpa %s994, 1

// kernel: tpu_custom_call.1
$region0: #{tpu_custom_call.1}
  #allocation0 [shape = 'u32[]', space=smem, size = 0x4, offset = 0x4, fixed_abs, tag = 'smem constant byte address 0x4 - core index']
  #allocation1 [shape = 'u32[72,128]{1,0:T(1,128)}', space=vmem, size = 0x9000, scoped, tag = 'internal scratch']
  %s0 = inlined_call_operand.vmem [shape: f32[2,8,32], index: 0, kind: input, shape index: {}]
  %s1 = inlined_call_operand.vmem [shape: f32[1,32], index: 1, kind: input, shape index: {}]
  %s2 = inlined_call_operand.vmem [shape: f32[1,32], index: 2, kind: input, shape index: {}]
  %s3 = inlined_call_operand.vmem [shape: f32[32,96], index: 3, kind: input, shape index: {}]
  %s4 = inlined_call_operand.vmem [shape: f32[4,8,32], index: 4, kind: input, shape index: {}]
  %s5 = inlined_call_operand.vmem [shape: f32[1,32], index: 5, kind: input, shape index: {}]
  %s6 = inlined_call_operand.vmem [shape: f32[1,32], index: 6, kind: input, shape index: {}]
  %s7 = inlined_call_operand.vmem [shape: f32[1,32], index: 7, kind: input, shape index: {}]
  %s8 = inlined_call_operand.vmem [shape: f32[32,128], index: 8, kind: input, shape index: {}]
  %s9 = inlined_call_operand.vmem [shape: f32[1,128], index: 9, kind: input, shape index: {}]
  %s10 = inlined_call_operand.vmem [shape: f32[128,32], index: 10, kind: input, shape index: {}]
  %s11 = inlined_call_operand.vmem [shape: f32[1,32], index: 11, kind: input, shape index: {}]
  %s12 = inlined_call_operand.hbm [shape: f32[2,8,32], index: 12, kind: output, shape index: {}]
  %s13 = sld [smem:[#allocation0]]
  $region81: #{tpu_custom_call.1} parent=0
    _
  %s15 = ssub.s32 1, %s13
  %s16 = scalar_select 0, %s15, %s13
  $region1: #{tpu_custom_call.1} parent=0
    #allocation2 [shape = 'u8[8192]{0}', space=vmem, size = 0x2000, scoped, tag = 'output window, operand 0']
    #allocation3 [shape = 's32[2]{0}', space=sflag, size = 0x8, scoped, tag = 'scoped memory for tpu_custom_call.1']
    %17 = vsyncpa [#allocation3], 0
    %s18 = scalar_lea.sflag [#allocation3], 1
    %19 = vsyncpa %s18, 0
    loop: start=0, step=1, limit=4
    $region2: #{tpu_custom_call.1} parent=1 // loop_pre_header
      _
    $region3: #{tpu_custom_call.1} parent=1 // loop_header
      %s21 = sphi 0, %s25
      %p22 = scmp.ge.s32.totalorder %s21, 4
      %s31 = sphi 0, %s33
      %s34 = sphi 0, %s31
      %s35 = sphi 0, %s34
      %s51 = sphi 0, %s35
      %s55 = sphi 0, %s55
      %s57 = sphi 0, %s55
      %s58 = sphi 0, %s57
      %s72 = sphi 0, %s58
      %s76 = sphi 0, %s76
      %s78 = sphi 0, %s76
      %s79 = sphi 0, %s78
      %s93 = sphi 0, %s79
      %s97 = sphi 0, %s97
      %s99 = sphi 0, %s97
      %s100 = sphi 0, %s99
      %s114 = sphi 0, %s100
      %s118 = sphi 0, %s118
      %s120 = sphi 0, %s118
      %s121 = sphi 0, %s120
      %s135 = sphi 0, %s121
      %s139 = sphi 0, %s139
      %s141 = sphi 0, %s139
      %s142 = sphi 0, %s141
      %s156 = sphi 0, %s142
      %s160 = sphi 0, %s160
      %s162 = sphi 0, %s160
      %s163 = sphi 0, %s162
      %s177 = sphi 0, %s163
      %s181 = sphi 0, %s181
      %s183 = sphi 0, %s181
      %s184 = sphi 0, %s183
      %s198 = sphi 0, %s184
      %s202 = sphi 0, %s202
      %s204 = sphi 0, %s202
      %s205 = sphi 0, %s204
      %s219 = sphi 0, %s205
      %s223 = sphi 0, %s223
      %s225 = sphi 0, %s223
      %s226 = sphi 0, %s225
      %s240 = sphi 0, %s226
      %s244 = sphi 0, %s244
      %s246 = sphi 0, %s244
      %s247 = sphi 0, %s246
      %s261 = sphi 0, %s247
      %s265 = sphi 0, %s265
      %s267 = sphi 0, %s265
      %s268 = sphi 0, %s267
      %s282 = sphi 0, %s268
      %s288 = sphi 0, %s290
      %s291 = sphi 0, %s288
      %s292 = sphi 0, %s291
      %s308 = sphi 0, %s292
    $region4: #{tpu_custom_call.1} parent=1 // loop_header_branch
      %24 = sbr.rel (%p22) target = $region8
    $region5: #{tpu_custom_call.1} parent=1 // loop_body
      %s26 = ssub.s32 %s21, 1
      %s27 = ssub.s32 %s21, 2
      %s28 = sadd.s32 %s21, 1
      %s29 = ssub.s32 %s21, %s28
      %p30 = scmp.eq.s32.totalorder %s29, 0
      %s32 = sadd.s32 %s31, 1
      %s33 = scalar_select %p30, %s31, %s32
      %p36 = pneg %p30
      %p37 = scmp.eq.s32.totalorder %s21, 1
      %p38 = por %p36, %p37
      %p39 = scmp.ne.s32.totalorder %s31, %s34
      %p40 = scmp.eq.s32.totalorder %s21, 0
      %p41 = por %p39, %p40
      %p42 = scmp.ne.s32.totalorder %s31, %s34
      %p43 = scmp.eq.s32.totalorder %s26, 1
      %p44 = por %p42, %p43
      %p45 = scmp.ne.s32.totalorder %s34, %s35
      %p46 = scmp.eq.s32.totalorder %s26, 0
      %p47 = por %p45, %p46
      %p48 = scmp.ne.s32.totalorder %s34, %s35
      %p49 = scmp.eq.s32.totalorder %s27, 1
      %p50 = por %p48, %p49
      %p52 = scmp.ne.s32.totalorder %s35, %s51
      %p53 = scmp.eq.s32.totalorder %s27, 0
      %p54 = por %p52, %p53
      %s56 = sadd.s32 %s55, 1
      %p59 = scmp.eq.s32.totalorder %s21, 1
      %p60 = scmp.ne.s32.totalorder %s55, %s57
      %p61 = scmp.eq.s32.totalorder %s21, 0
      %p62 = por %p60, %p61
      %p63 = scmp.ne.s32.totalorder %s55, %s57
      %p64 = scmp.eq.s32.totalorder %s26, 1
      %p65 = por %p63, %p64
      %p66 = scmp.ne.s32.totalorder %s57, %s58
      %p67 = scmp.eq.s32.totalorder %s26, 0
      %p68 = por %p66, %p67
      %p69 = scmp.ne.s32.totalorder %s57, %s58
      %p70 = scmp.eq.s32.totalorder %s27, 1
      %p71 = por %p69, %p70
      %p73 = scmp.ne.s32.totalorder %s58, %s72
      %p74 = scmp.eq.s32.totalorder %s27, 0
      %p75 = por %p73, %p74
      %s77 = sadd.s32 %s76, 1
      %p80 = scmp.eq.s32.totalorder %s21, 1
      %p81 = scmp.ne.s32.totalorder %s76, %s78
      %p82 = scmp.eq.s32.totalorder %s21, 0
      %p83 = por %p81, %p82
      %p84 = scmp.ne.s32.totalorder %s76, %s78
      %p85 = scmp.eq.s32.totalorder %s26, 1
      %p86 = por %p84, %p85
      %p87 = scmp.ne.s32.totalorder %s78, %s79
      %p88 = scmp.eq.s32.totalorder %s26, 0
      %p89 = por %p87, %p88
      %p90 = scmp.ne.s32.totalorder %s78, %s79
      %p91 = scmp.eq.s32.totalorder %s27, 1
      %p92 = por %p90, %p91
      %p94 = scmp.ne.s32.totalorder %s79, %s93
      %p95 = scmp.eq.s32.totalorder %s27, 0
      %p96 = por %p94, %p95
      %s98 = sadd.s32 %s97, 1
      %p101 = scmp.eq.s32.totalorder %s21, 1
      %p102 = scmp.ne.s32.totalorder %s97, %s99
      %p103 = scmp.eq.s32.totalorder %s21, 0
      %p104 = por %p102, %p103
      %p105 = scmp.ne.s32.totalorder %s97, %s99
      %p106 = scmp.eq.s32.totalorder %s26, 1
      %p107 = por %p105, %p106
      %p108 = scmp.ne.s32.totalorder %s99, %s100
      %p109 = scmp.eq.s32.totalorder %s26, 0
      %p110 = por %p108, %p109
      %p111 = scmp.ne.s32.totalorder %s99, %s100
      %p112 = scmp.eq.s32.totalorder %s27, 1
      %p113 = por %p111, %p112
      %p115 = scmp.ne.s32.totalorder %s100, %s114
      %p116 = scmp.eq.s32.totalorder %s27, 0
      %p117 = por %p115, %p116
      %s119 = sadd.s32 %s118, 1
      %p122 = scmp.eq.s32.totalorder %s21, 1
      %p123 = scmp.ne.s32.totalorder %s118, %s120
      %p124 = scmp.eq.s32.totalorder %s21, 0
      %p125 = por %p123, %p124
      %p126 = scmp.ne.s32.totalorder %s118, %s120
      %p127 = scmp.eq.s32.totalorder %s26, 1
      %p128 = por %p126, %p127
      %p129 = scmp.ne.s32.totalorder %s120, %s121
      %p130 = scmp.eq.s32.totalorder %s26, 0
      %p131 = por %p129, %p130
      %p132 = scmp.ne.s32.totalorder %s120, %s121
      %p133 = scmp.eq.s32.totalorder %s27, 1
      %p134 = por %p132, %p133
      %p136 = scmp.ne.s32.totalorder %s121, %s135
      %p137 = scmp.eq.s32.totalorder %s27, 0
      %p138 = por %p136, %p137
      %s140 = sadd.s32 %s139, 1
      %p143 = scmp.eq.s32.totalorder %s21, 1
      %p144 = scmp.ne.s32.totalorder %s139, %s141
      %p145 = scmp.eq.s32.totalorder %s21, 0
      %p146 = por %p144, %p145
      %p147 = scmp.ne.s32.totalorder %s139, %s141
      %p148 = scmp.eq.s32.totalorder %s26, 1
      %p149 = por %p147, %p148
      %p150 = scmp.ne.s32.totalorder %s141, %s142
      %p151 = scmp.eq.s32.totalorder %s26, 0
      %p152 = por %p150, %p151
      %p153 = scmp.ne.s32.totalorder %s141, %s142
      %p154 = scmp.eq.s32.totalorder %s27, 1
      %p155 = por %p153, %p154
      %p157 = scmp.ne.s32.totalorder %s142, %s156
      %p158 = scmp.eq.s32.totalorder %s27, 0
      %p159 = por %p157, %p158
      %s161 = sadd.s32 %s160, 1
      %p164 = scmp.eq.s32.totalorder %s21, 1
      %p165 = scmp.ne.s32.totalorder %s160, %s162
      %p166 = scmp.eq.s32.totalorder %s21, 0
      %p167 = por %p165, %p166
      %p168 = scmp.ne.s32.totalorder %s160, %s162
      %p169 = scmp.eq.s32.totalorder %s26, 1
      %p170 = por %p168, %p169
      %p171 = scmp.ne.s32.totalorder %s162, %s163
      %p172 = scmp.eq.s32.totalorder %s26, 0
      %p173 = por %p171, %p172
      %p174 = scmp.ne.s32.totalorder %s162, %s163
      %p175 = scmp.eq.s32.totalorder %s27, 1
      %p176 = por %p174, %p175
      %p178 = scmp.ne.s32.totalorder %s163, %s177
      %p179 = scmp.eq.s32.totalorder %s27, 0
      %p180 = por %p178, %p179
      %s182 = sadd.s32 %s181, 1
      %p185 = scmp.eq.s32.totalorder %s21, 1
      %p186 = scmp.ne.s32.totalorder %s181, %s183
      %p187 = scmp.eq.s32.totalorder %s21, 0
      %p188 = por %p186, %p187
      %p189 = scmp.ne.s32.totalorder %s181, %s183
      %p190 = scmp.eq.s32.totalorder %s26, 1
      %p191 = por %p189, %p190
      %p192 = scmp.ne.s32.totalorder %s183, %s184
      %p193 = scmp.eq.s32.totalorder %s26, 0
      %p194 = por %p192, %p193
      %p195 = scmp.ne.s32.totalorder %s183, %s184
      %p196 = scmp.eq.s32.totalorder %s27, 1
      %p197 = por %p195, %p196
      %p199 = scmp.ne.s32.totalorder %s184, %s198
      %p200 = scmp.eq.s32.totalorder %s27, 0
      %p201 = por %p199, %p200
      %s203 = sadd.s32 %s202, 1
      %p206 = scmp.eq.s32.totalorder %s21, 1
      %p207 = scmp.ne.s32.totalorder %s202, %s204
      %p208 = scmp.eq.s32.totalorder %s21, 0
      %p209 = por %p207, %p208
      %p210 = scmp.ne.s32.totalorder %s202, %s204
      %p211 = scmp.eq.s32.totalorder %s26, 1
      %p212 = por %p210, %p211
      %p213 = scmp.ne.s32.totalorder %s204, %s205
      %p214 = scmp.eq.s32.totalorder %s26, 0
      %p215 = por %p213, %p214
      %p216 = scmp.ne.s32.totalorder %s204, %s205
      %p217 = scmp.eq.s32.totalorder %s27, 1
      %p218 = por %p216, %p217
      %p220 = scmp.ne.s32.totalorder %s205, %s219
      %p221 = scmp.eq.s32.totalorder %s27, 0
      %p222 = por %p220, %p221
      %s224 = sadd.s32 %s223, 1
      %p227 = scmp.eq.s32.totalorder %s21, 1
      %p228 = scmp.ne.s32.totalorder %s223, %s225
      %p229 = scmp.eq.s32.totalorder %s21, 0
      %p230 = por %p228, %p229
      %p231 = scmp.ne.s32.totalorder %s223, %s225
      %p232 = scmp.eq.s32.totalorder %s26, 1
      %p233 = por %p231, %p232
      %p234 = scmp.ne.s32.totalorder %s225, %s226
      %p235 = scmp.eq.s32.totalorder %s26, 0
      %p236 = por %p234, %p235
      %p237 = scmp.ne.s32.totalorder %s225, %s226
      %p238 = scmp.eq.s32.totalorder %s27, 1
      %p239 = por %p237, %p238
      %p241 = scmp.ne.s32.totalorder %s226, %s240
      %p242 = scmp.eq.s32.totalorder %s27, 0
      %p243 = por %p241, %p242
      %s245 = sadd.s32 %s244, 1
      %p248 = scmp.eq.s32.totalorder %s21, 1
      %p249 = scmp.ne.s32.totalorder %s244, %s246
      %p250 = scmp.eq.s32.totalorder %s21, 0
      %p251 = por %p249, %p250
      %p252 = scmp.ne.s32.totalorder %s244, %s246
      %p253 = scmp.eq.s32.totalorder %s26, 1
      %p254 = por %p252, %p253
      %p255 = scmp.ne.s32.totalorder %s246, %s247
      %p256 = scmp.eq.s32.totalorder %s26, 0
      %p257 = por %p255, %p256
      %p258 = scmp.ne.s32.totalorder %s246, %s247
      %p259 = scmp.eq.s32.totalorder %s27, 1
      %p260 = por %p258, %p259
      %p262 = scmp.ne.s32.totalorder %s247, %s261
      %p263 = scmp.eq.s32.totalorder %s27, 0
      %p264 = por %p262, %p263
      %s266 = sadd.s32 %s265, 1
      %p269 = scmp.eq.s32.totalorder %s21, 1
      %p270 = scmp.ne.s32.totalorder %s265, %s267
      %p271 = scmp.eq.s32.totalorder %s21, 0
      %p272 = por %p270, %p271
      %p273 = scmp.ne.s32.totalorder %s265, %s267
      %p274 = scmp.eq.s32.totalorder %s26, 1
      %p275 = por %p273, %p274
      %p276 = scmp.ne.s32.totalorder %s267, %s268
      %p277 = scmp.eq.s32.totalorder %s26, 0
      %p278 = por %p276, %p277
      %p279 = scmp.ne.s32.totalorder %s267, %s268
      %p280 = scmp.eq.s32.totalorder %s27, 1
      %p281 = por %p279, %p280
      %p283 = scmp.ne.s32.totalorder %s268, %s282
      %p284 = scmp.eq.s32.totalorder %s27, 0
      %p285 = por %p283, %p284
      %s286 = ssub.s32 %s21, %s28
      %p287 = scmp.eq.s32.totalorder %s286, 0
      %s289 = sadd.s32 %s288, 1
      %s290 = scalar_select %p287, %s288, %s289
      %p293 = pneg %p287
      %p294 = scmp.eq.s32.totalorder %s21, 1
      %p295 = por %p293, %p294
      %p296 = scmp.ne.s32.totalorder %s288, %s291
      %p297 = scmp.eq.s32.totalorder %s21, 0
      %p298 = por %p296, %p297
      %p299 = scmp.ne.s32.totalorder %s288, %s291
      %p300 = scmp.eq.s32.totalorder %s26, 1
      %p301 = por %p299, %p300
      %p302 = scmp.ne.s32.totalorder %s291, %s292
      %p303 = scmp.eq.s32.totalorder %s26, 0
      %p304 = por %p302, %p303
      %p305 = scmp.ne.s32.totalorder %s291, %s292
      %p306 = scmp.eq.s32.totalorder %s27, 1
      %p307 = por %p305, %p306
      %p309 = scmp.ne.s32.totalorder %s292, %s308
      %p310 = scmp.eq.s32.totalorder %s27, 0
      %p311 = por %p309, %p310
      %p312 = scmp.le.s32.totalorder 1, %s21
      %p313 = scmp.lt.s32.totalorder %s21, 3
      %p314 = pnand %p312, %p313
      %p315 = pneg %p314
      // Predicated region
      $region9: #{tpu_custom_call.1} parent=5 // pred_check
        _
      $region10: #{tpu_custom_call.1} parent=5 // pred_check_branch
        %317 = sbr.rel (%p314) target = $region12
      $region11: #{tpu_custom_call.1} parent=5 // pred_region
        %s318 = ssub.s32 %s21, 1
        // Predicated region
        $region13: #{tpu_custom_call.1} parent=11 // pred_check
          %p319 = pneg %p68
        $region14: #{tpu_custom_call.1} parent=11 // pred_check_branch
          %321 = sbr.rel (%p319) target = $region16
        $region15: #{tpu_custom_call.1} parent=11 // pred_region
          _
        $region16: #{tpu_custom_call.1} parent=11 // pred_fallthru
          _
        // Predicated region
        $region17: #{tpu_custom_call.1} parent=11 // pred_check
          %p322 = pneg %p89
        $region18: #{tpu_custom_call.1} parent=11 // pred_check_branch
          %324 = sbr.rel (%p322) target = $region20
        $region19: #{tpu_custom_call.1} parent=11 // pred_region
          _
        $region20: #{tpu_custom_call.1} parent=11 // pred_fallthru
          _
        // Predicated region
        $region21: #{tpu_custom_call.1} parent=11 // pred_check
          %p325 = pneg %p110
        $region22: #{tpu_custom_call.1} parent=11 // pred_check_branch
          %327 = sbr.rel (%p325) target = $region24
        $region23: #{tpu_custom_call.1} parent=11 // pred_region
          _
        $region24: #{tpu_custom_call.1} parent=11 // pred_fallthru
          _
        // Predicated region
        $region25: #{tpu_custom_call.1} parent=11 // pred_check
          %p328 = pneg %p131
        $region26: #{tpu_custom_call.1} parent=11 // pred_check_branch
          %330 = sbr.rel (%p328) target = $region28
        $region27: #{tpu_custom_call.1} parent=11 // pred_region
          _
        $region28: #{tpu_custom_call.1} parent=11 // pred_fallthru
          _
        // Predicated region
        $region29: #{tpu_custom_call.1} parent=11 // pred_check
          %p331 = pneg %p152
        $region30: #{tpu_custom_call.1} parent=11 // pred_check_branch
          %333 = sbr.rel (%p331) target = $region32
        $region31: #{tpu_custom_call.1} parent=11 // pred_region
          _
        $region32: #{tpu_custom_call.1} parent=11 // pred_fallthru
          _
        // Predicated region
        $region33: #{tpu_custom_call.1} parent=11 // pred_check
          %p334 = pneg %p173
        $region34: #{tpu_custom_call.1} parent=11 // pred_check_branch
          %336 = sbr.rel (%p334) target = $region36
        $region35: #{tpu_custom_call.1} parent=11 // pred_region
          _
        $region36: #{tpu_custom_call.1} parent=11 // pred_fallthru
          _
        // Predicated region
        $region37: #{tpu_custom_call.1} parent=11 // pred_check
          %p337 = pneg %p194
        $region38: #{tpu_custom_call.1} parent=11 // pred_check_branch
          %339 = sbr.rel (%p337) target = $region40
        $region39: #{tpu_custom_call.1} parent=11 // pred_region
          _
        $region40: #{tpu_custom_call.1} parent=11 // pred_fallthru
          _
        // Predicated region
        $region41: #{tpu_custom_call.1} parent=11 // pred_check
          %p340 = pneg %p215
        $region42: #{tpu_custom_call.1} parent=11 // pred_check_branch
          %342 = sbr.rel (%p340) target = $region44
        $region43: #{tpu_custom_call.1} parent=11 // pred_region
          _
        $region44: #{tpu_custom_call.1} parent=11 // pred_fallthru
          _
        // Predicated region
        $region45: #{tpu_custom_call.1} parent=11 // pred_check
          %p343 = pneg %p236
        $region46: #{tpu_custom_call.1} parent=11 // pred_check_branch
          %345 = sbr.rel (%p343) target = $region48
        $region47: #{tpu_custom_call.1} parent=11 // pred_region
          _
        $region48: #{tpu_custom_call.1} parent=11 // pred_fallthru
          _
        // Predicated region
        $region49: #{tpu_custom_call.1} parent=11 // pred_check
          %p346 = pneg %p257
        $region50: #{tpu_custom_call.1} parent=11 // pred_check_branch
          %348 = sbr.rel (%p346) target = $region52
        $region51: #{tpu_custom_call.1} parent=11 // pred_region
          _
        $region52: #{tpu_custom_call.1} parent=11 // pred_fallthru
          _
        // Predicated region
        $region53: #{tpu_custom_call.1} parent=11 // pred_check
          %p349 = pneg %p278
        $region54: #{tpu_custom_call.1} parent=11 // pred_check_branch
          %351 = sbr.rel (%p349) target = $region56
        $region55: #{tpu_custom_call.1} parent=11 // pred_region
          _
        $region56: #{tpu_custom_call.1} parent=11 // pred_fallthru
          _
      $region12: #{tpu_custom_call.1} parent=5 // pred_fallthru
        _
      %p352 = scmp.lt.s32.totalorder %s21, 2
      // Predicated region
      $region57: #{tpu_custom_call.1} parent=5 // pred_check
        %p353 = pneg %p352
      $region58: #{tpu_custom_call.1} parent=5 // pred_check_branch
        %355 = sbr.rel (%p353) target = $region60
      $region59: #{tpu_custom_call.1} parent=5 // pred_region
        // Predicated region
        $region61: #{tpu_custom_call.1} parent=59 // pred_check
          %p356 = pneg %p41
        $region62: #{tpu_custom_call.1} parent=59 // pred_check_branch
          %358 = sbr.rel (%p356) target = $region64
        $region63: #{tpu_custom_call.1} parent=59 // pred_region
          %p359 = scmp.lt.s32.totalorder %s21, 1
          %s360 = scalar_select %p359, %s21, 1
          %s361 = smul.addr %s360, 8
          %s362 = scalar_lea.vmem %s0, %s361
        $region64: #{tpu_custom_call.1} parent=59 // pred_fallthru
          _
      $region60: #{tpu_custom_call.1} parent=5 // pred_fallthru
        _
      %p363 = scmp.le.s32.totalorder 1, %s21
      %p364 = scmp.lt.s32.totalorder %s21, 3
      %p365 = pnand %p363, %p364
      %p366 = pneg %p365
      // Predicated region
      $region65: #{tpu_custom_call.1} parent=5 // pred_check
        _
      $region66: #{tpu_custom_call.1} parent=5 // pred_check_branch
        %368 = sbr.rel (%p365) target = $region68
      $region67: #{tpu_custom_call.1} parent=5 // pred_region
        %s369 = ssub.s32 %s21, 1
        %p370 = scmp.lt.s32.totalorder %s26, 1
        %s371 = scalar_select %p370, %s26, 1
        %s372 = smul.addr %s371, 8
        %s373 = scalar_lea.vmem %s0, %s372
        %p374 = pneg %p47
        %p375 = pneg %p44
        %p376 = pneg %p68
        %p377 = pneg %p65
        %p378 = pneg %p89
        %p379 = pneg %p86
        %p380 = pneg %p110
        %p381 = pneg %p107
        %p382 = pneg %p131
        %p383 = pneg %p128
        %p384 = pneg %p152
        %p385 = pneg %p149
        %p386 = pneg %p173
        %p387 = pneg %p170
        %p388 = pneg %p194
        %p389 = pneg %p191
        %p390 = pneg %p215
        %p391 = pneg %p212
        %p392 = pneg %p236
        %p393 = pneg %p233
        %p394 = pneg %p257
        %p395 = pneg %p254
        %p396 = pneg %p278
        %p397 = pneg %p275
        %p398 = pneg %p304
        %p399 = pneg %p301
        %s400 = sand.u32 %s291, 1
        %s401 = scalar_lea.sflag [#allocation3], %s400
        %s402 = sand.u32 %s291, 1
        %s403 = smul.addr %s402, 8
        %s404 = scalar_lea.vmem [#allocation2], %s403
        %p405 = scmp.lt.s32.totalorder %s26, 1
        %s406 = scalar_select %p405, %s26, 1
        %s407 = smul.addr %s406, 8
        %s408 = scalar_lea.vmem %s0, %s407
        %v409 = vld [vmem:[%s408] sm:$0xff]
        %v410 = vld [vmem:[%s1] sm:$0x1]
        %v411 = vld [vmem:[%s2] sm:$0x1]
        %vm412 = vcmask 261120
        %v413 = vsel %vm412, %v409, 0.0
        %414 = vadd.xlane.f32.xlu0 %v413
        %v415 = vpop.xlane.xlu0 %414
        %v416 = vrcp.pop 32.0
        %v417 = vmul.f32 32.0, %v416
        %v418 = vsub.f32 1.0, %v417
        %v419 = vmul.f32 %v416, %v418
        %v420 = vadd.f32 %v416, %v419
        %vm421 = vweird.f32 %v416
        %v422 = vsel %vm421, %v416, %v420
        %v423 = vmul.f32 %v415, %v422
        %v424 = vsub.f32 %v409, %v423
        %v425 = vmul.f32 %v424, %v424
        %v426 = vsel %vm412, %v425, 0.0
        %427 = vadd.xlane.f32.xlu0 %v426
        %v428 = vpop.xlane.xlu0 %427
        %v429 = vmul.f32 %v428, %v422
        %v430 = vadd.f32 %v429, 1e-05
        %v431 = vrsqrt.pop %v430
        %v432 = vmul.f32 %v431, %v430
        %v433 = vmul.f32 %v432, %v431
        %v434 = vmul.f32 0.5, %v433
        %v435 = vsub.f32 1.5, %v434
        %v436 = vmul.f32 %v431, %v435
        %vm437 = vweird.f32 %v430
        %vm438 = vweird.f32 %v431
        %vm439 = vmor %vm437, %vm438
        %v440 = vsel %vm439, %v431, %v436
        %v441 = vmul.f32 %v424, %v440
        %v443 = vperm.slane %v410, 0
        %v445 = vmul.f32 %v441, %v443
        %v447 = vperm.slane %v411, 0
        %v449 = vadd.f32 %v445, %v447
        %v450 = vld [vmem:[%s3] sm:$0xff]
        %v451 = vld [vmem:[%s3 + $0x8] sm:$0xff]
        %v452 = vld [vmem:[%s3 + $0x10] sm:$0xff]
        %v453 = vld [vmem:[%s3 + $0x18] sm:$0xff]
        %v455 = vsel %vm412, %v449, 0
        %457 = vmatpush.msra.mxu0 0.0
        %458 = vmatpush.msra.mxu0 0.0
        %459 = vmatpush.msra.mxu0 0.0
        %460 = vmatpush.msra.mxu0 0.0
        %461 = vmatpush.msra.mxu0 0.0
        %462 = vmatpush.msra.mxu0 0.0
        %463 = vmatpush.msra.mxu0 0.0
        %464 = vmatpush.msra.mxu0 0.0
        %465 = vmatpush.msra.mxu0 0.0
        %466 = vmatpush.msra.mxu0 0.0
        %467 = vmatpush.msra.mxu0 0.0
        %468 = vmatpush.msra.mxu0 0.0
        %469 = vmatpush.msra.mxu0 %v453
        %470 = vmatpush.msra.mxu0 %v452
        %471 = vmatpush.msra.mxu0 %v451
        %472 = vmatpush.msra.mxu0 %v450
        %473 = vmatmul.f32.gmra.mxu0 %v455
        %v474 = vpop.f32.mrf.mxu0
        %v475 = vadd.f32 0.0, %v474
        %476 = vdwg.mxu0
        %v477 = vlaneseq
        %v478 = vshrl.u32 %v477, 7
        %v479 = vlaneseq
        %v480 = vand.u32 %v479, 127
        %vm481 = vcmp.le.s32.totalorder %v480, %v478
        %483 = vrot.lane.b32.xlu0 %v475, 96
        %v484 = vpop.permute.xlu0 %483
        %vm485 = vcmask 64512
        %v486 = vsel %vm485, %v475, 0
        %v488 = vsel %vm485, %v484, 0
        %490 = vmatpush.xpose.msra.mxu0 0.0
        %491 = vmatpush.xpose.msra.mxu0 0.0
        %492 = vmatpush.xpose.msra.mxu0 0.0
        %493 = vmatpush.xpose.msra.mxu0 0.0
        %494 = vmatpush.xpose.msra.mxu0 0.0
        %495 = vmatpush.xpose.msra.mxu0 0.0
        %496 = vmatpush.xpose.msra.mxu0 0.0
        %497 = vmatpush.xpose.msra.mxu0 0.0
        %498 = vmatpush.xpose.msra.mxu0 0.0
        %499 = vmatpush.xpose.msra.mxu0 0.0
        %500 = vmatpush.xpose.msra.mxu0 0.0
        %501 = vmatpush.xpose.msra.mxu0 0.0
        %502 = vmatpush.xpose.msra.mxu0 0.0
        %503 = vmatpush.xpose.msra.mxu0 0.0
        %504 = vmatpush.xpose.msra.mxu0 0.0
        %505 = vmatpush.xpose.msra.mxu0 %v488
        %506 = vmatmul.f32.gmra.mxu0 %v486
        %v507 = vpop.f32.mrf.mxu0
        %v508 = vadd.f32 0.0, %v507
        %509 = vdwg.mxu0
        %v510 = vsel %vm481, %v508, -1e+30
        %v511 = vsel %vm485, %v510, -inf
        %512 = vmax.xlane.f32.xlu0 %v511
        %v513 = vpop.xlane.xlu0 %512
        %v514 = vsub.f32 %v510, %v513
        %v515 = vmul.f32 %v514, 1.442695
        %v516 = vpow.pop %v515
        %v517 = vsel %vm485, %v516, 0.0
        %518 = vadd.xlane.f32.xlu0 %v517
        %v519 = vpop.xlane.xlu0 %518
        %v520 = vrcp.pop %v519
        %v521 = vmul.f32 %v516, %v520
        %522 = vrot.lane.b32.xlu0 %v475, 64
        %v523 = vpop.permute.xlu0 %522
        %v526 = vsel %vm485, %v521, 0
        %528 = vmatpush.msra.mxu0 0.0
        %529 = vmatpush.msra.mxu0 0.0
        %530 = vmatpush.msra.mxu0 0.0
        %531 = vmatpush.msra.mxu0 0.0
        %532 = vmatpush.msra.mxu0 0.0
        %533 = vmatpush.msra.mxu0 0.0
        %534 = vmatpush.msra.mxu0 0.0
        %535 = vmatpush.msra.mxu0 0.0
        %536 = vmatpush.msra.mxu0 0.0
        %537 = vmatpush.msra.mxu0 0.0
        %538 = vmatpush.msra.mxu0 0.0
        %539 = vmatpush.msra.mxu0 0.0
        %540 = vmatpush.msra.mxu0 0.0
        %541 = vmatpush.msra.mxu0 0.0
        %542 = vmatpush.msra.mxu0 0.0
        %543 = vmatpush.msra.mxu0 %v523
        %544 = vmatmul.f32.gmra.mxu0 %v526
        %v545 = vpop.f32.mrf.mxu0
        %v546 = vadd.f32 0.0, %v545
        %547 = vdwg.mxu0
        %v548 = vld [vmem:[%s4] sm:$0xff]
        %549 = vrot.lane.b32.xlu0 %v475, 120
        %v550 = vpop.permute.xlu0 %549
        %551 = vrot.lane.b32.xlu0 %v475, 88
        %v552 = vpop.permute.xlu0 %551
        %v553 = vsel %vm485, %v550, 0
        %v555 = vsel %vm485, %v552, 0
        %557 = vmatpush.xpose.msra.mxu0 0.0
        %558 = vmatpush.xpose.msra.mxu0 0.0
        %559 = vmatpush.xpose.msra.mxu0 0.0
        %560 = vmatpush.xpose.msra.mxu0 0.0
        %561 = vmatpush.xpose.msra.mxu0 0.0
        %562 = vmatpush.xpose.msra.mxu0 0.0
        %563 = vmatpush.xpose.msra.mxu0 0.0
        %564 = vmatpush.xpose.msra.mxu0 0.0
        %565 = vmatpush.xpose.msra.mxu0 0.0
        %566 = vmatpush.xpose.msra.mxu0 0.0
        %567 = vmatpush.xpose.msra.mxu0 0.0
        %568 = vmatpush.xpose.msra.mxu0 0.0
        %569 = vmatpush.xpose.msra.mxu0 0.0
        %570 = vmatpush.xpose.msra.mxu0 0.0
        %571 = vmatpush.xpose.msra.mxu0 0.0
        %572 = vmatpush.xpose.msra.mxu0 %v555
        %573 = vmatmul.f32.gmra.mxu0 %v553
        %v574 = vpop.f32.mrf.mxu0
        %v575 = vadd.f32 0.0, %v574
        %576 = vdwg.mxu0
        %v577 = vsel %vm481, %v575, -1e+30
        %v578 = vsel %vm485, %v577, -inf
        %579 = vmax.xlane.f32.xlu0 %v578
        %v580 = vpop.xlane.xlu0 %579
        %v581 = vsub.f32 %v577, %v580
        %v582 = vmul.f32 %v581, 1.442695
        %v583 = vpow.pop %v582
        %v584 = vsel %vm485, %v583, 0.0
        %585 = vadd.xlane.f32.xlu0 %v584
        %v586 = vpop.xlane.xlu0 %585
        %v587 = vrcp.pop %v586
        %v588 = vmul.f32 %v583, %v587
        %589 = vrot.lane.b32.xlu0 %v475, 56
        %v590 = vpop.permute.xlu0 %589
        %v593 = vsel %vm485, %v588, 0
        %595 = vmatpush.msra.mxu0 0.0
        %596 = vmatpush.msra.mxu0 0.0
        %597 = vmatpush.msra.mxu0 0.0
        %598 = vmatpush.msra.mxu0 0.0
        %599 = vmatpush.msra.mxu0 0.0
        %600 = vmatpush.msra.mxu0 0.0
        %601 = vmatpush.msra.mxu0 0.0
        %602 = vmatpush.msra.mxu0 0.0
        %603 = vmatpush.msra.mxu0 0.0
        %604 = vmatpush.msra.mxu0 0.0
        %605 = vmatpush.msra.mxu0 0.0
        %606 = vmatpush.msra.mxu0 0.0
        %607 = vmatpush.msra.mxu0 0.0
        %608 = vmatpush.msra.mxu0 0.0
        %609 = vmatpush.msra.mxu0 0.0
        %610 = vmatpush.msra.mxu0 %v590
        %611 = vmatmul.f32.gmra.mxu0 %v593
        %v612 = vpop.f32.mrf.mxu0
        %v613 = vadd.f32 0.0, %v612
        %614 = vdwg.mxu0
        %s615 = scalar_lea.vmem %s4, 8
        %v616 = vld [vmem:[%s615] sm:$0xff]
        %v618 = vsel %vm485, %v613, 0
        %620 = vmatpush.msra.mxu0 0.0
        %621 = vmatpush.msra.mxu0 0.0
        %622 = vmatpush.msra.mxu0 0.0
        %623 = vmatpush.msra.mxu0 0.0
        %624 = vmatpush.msra.mxu0 0.0
        %625 = vmatpush.msra.mxu0 0.0
        %626 = vmatpush.msra.mxu0 0.0
        %627 = vmatpush.msra.mxu0 0.0
        %628 = vmatpush.msra.mxu0 0.0
        %629 = vmatpush.msra.mxu0 0.0
        %630 = vmatpush.msra.mxu0 0.0
        %631 = vmatpush.msra.mxu0 0.0
        %632 = vmatpush.msra.mxu0 0.0
        %633 = vmatpush.msra.mxu0 0.0
        %634 = vmatpush.msra.mxu0 0.0
        %635 = vmatpush.msra.mxu0 %v616
        %636 = vmatmul.f32.gmra.mxu0 %v618
        %v637 = vpop.f32.mrf.mxu0
        %v638 = vadd.f32 0.0, %v637
        %639 = vdwg.mxu0
        %v641 = vsel %vm485, %v546, 0
        %643 = vmatpush.msra.mxu0 0.0
        %644 = vmatpush.msra.mxu0 0.0
        %645 = vmatpush.msra.mxu0 0.0
        %646 = vmatpush.msra.mxu0 0.0
        %647 = vmatpush.msra.mxu0 0.0
        %648 = vmatpush.msra.mxu0 0.0
        %649 = vmatpush.msra.mxu0 0.0
        %650 = vmatpush.msra.mxu0 0.0
        %651 = vmatpush.msra.mxu0 0.0
        %652 = vmatpush.msra.mxu0 0.0
        %653 = vmatpush.msra.mxu0 0.0
        %654 = vmatpush.msra.mxu0 0.0
        %655 = vmatpush.msra.mxu0 0.0
        %656 = vmatpush.msra.mxu0 0.0
        %657 = vmatpush.msra.mxu0 0.0
        %658 = vmatpush.msra.mxu0 %v548
        %659 = vmatmul.f32.gmra.mxu0 %v641
        %v660 = vpop.f32.mrf.mxu0
        %v661 = vadd.f32 %v638, %v660
        %662 = vdwg.mxu0
        %663 = vrot.lane.b32.xlu0 %v475, 112
        %v664 = vpop.permute.xlu0 %663
        %665 = vrot.lane.b32.xlu0 %v475, 80
        %v666 = vpop.permute.xlu0 %665
        %v667 = vsel %vm485, %v664, 0
        %v669 = vsel %vm485, %v666, 0
        %671 = vmatpush.xpose.msra.mxu0 0.0
        %672 = vmatpush.xpose.msra.mxu0 0.0
        %673 = vmatpush.xpose.msra.mxu0 0.0
        %674 = vmatpush.xpose.msra.mxu0 0.0
        %675 = vmatpush.xpose.msra.mxu0 0.0
        %676 = vmatpush.xpose.msra.mxu0 0.0
        %677 = vmatpush.xpose.msra.mxu0 0.0
        %678 = vmatpush.xpose.msra.mxu0 0.0
        %679 = vmatpush.xpose.msra.mxu0 0.0
        %680 = vmatpush.xpose.msra.mxu0 0.0
        %681 = vmatpush.xpose.msra.mxu0 0.0
        %682 = vmatpush.xpose.msra.mxu0 0.0
        %683 = vmatpush.xpose.msra.mxu0 0.0
        %684 = vmatpush.xpose.msra.mxu0 0.0
        %685 = vmatpush.xpose.msra.mxu0 0.0
        %686 = vmatpush.xpose.msra.mxu0 %v669
        %687 = vmatmul.f32.gmra.mxu0 %v667
        %v688 = vpop.f32.mrf.mxu0
        %v689 = vadd.f32 0.0, %v688
        %690 = vdwg.mxu0
        %v691 = vsel %vm481, %v689, -1e+30
        %v692 = vsel %vm485, %v691, -inf
        %693 = vmax.xlane.f32.xlu0 %v692
        %v694 = vpop.xlane.xlu0 %693
        %v695 = vsub.f32 %v691, %v694
        %v696 = vmul.f32 %v695, 1.442695
        %v697 = vpow.pop %v696
        %v698 = vsel %vm485, %v697, 0.0
        %699 = vadd.xlane.f32.xlu0 %v698
        %v700 = vpop.xlane.xlu0 %699
        %v701 = vrcp.pop %v700
        %v702 = vmul.f32 %v697, %v701
        %703 = vrot.lane.b32.xlu0 %v475, 48
        %v704 = vpop.permute.xlu0 %703
        %v707 = vsel %vm485, %v702, 0
        %709 = vmatpush.msra.mxu0 0.0
        %710 = vmatpush.msra.mxu0 0.0
        %711 = vmatpush.msra.mxu0 0.0
        %712 = vmatpush.msra.mxu0 0.0
        %713 = vmatpush.msra.mxu0 0.0
        %714 = vmatpush.msra.mxu0 0.0
        %715 = vmatpush.msra.mxu0 0.0
        %716 = vmatpush.msra.mxu0 0.0
        %717 = vmatpush.msra.mxu0 0.0
        %718 = vmatpush.msra.mxu0 0.0
        %719 = vmatpush.msra.mxu0 0.0
        %720 = vmatpush.msra.mxu0 0.0
        %721 = vmatpush.msra.mxu0 0.0
        %722 = vmatpush.msra.mxu0 0.0
        %723 = vmatpush.msra.mxu0 0.0
        %724 = vmatpush.msra.mxu0 %v704
        %725 = vmatmul.f32.gmra.mxu0 %v707
        %v726 = vpop.f32.mrf.mxu0
        %v727 = vadd.f32 0.0, %v726
        %728 = vdwg.mxu0
        %s729 = scalar_lea.vmem %s4, 16
        %v730 = vld [vmem:[%s729] sm:$0xff]
        %v732 = vsel %vm485, %v727, 0
        %734 = vmatpush.msra.mxu0 0.0
        %735 = vmatpush.msra.mxu0 0.0
        %736 = vmatpush.msra.mxu0 0.0
        %737 = vmatpush.msra.mxu0 0.0
        %738 = vmatpush.msra.mxu0 0.0
        %739 = vmatpush.msra.mxu0 0.0
        %740 = vmatpush.msra.mxu0 0.0
        %741 = vmatpush.msra.mxu0 0.0
        %742 = vmatpush.msra.mxu0 0.0
        %743 = vmatpush.msra.mxu0 0.0
        %744 = vmatpush.msra.mxu0 0.0
        %745 = vmatpush.msra.mxu0 0.0
        %746 = vmatpush.msra.mxu0 0.0
        %747 = vmatpush.msra.mxu0 0.0
        %748 = vmatpush.msra.mxu0 0.0
        %749 = vmatpush.msra.mxu0 %v730
        %750 = vmatmul.f32.gmra.mxu0 %v732
        %v751 = vpop.f32.mrf.mxu0
        %v752 = vadd.f32 0.0, %v751
        %753 = vdwg.mxu0
        %v754 = vadd.f32 %v661, %v752
        %755 = vrot.lane.b32.xlu0 %v475, 104
        %v756 = vpop.permute.xlu0 %755
        %757 = vrot.lane.b32.xlu0 %v475, 72
        %v758 = vpop.permute.xlu0 %757
        %v759 = vsel %vm485, %v756, 0
        %v761 = vsel %vm485, %v758, 0
        %763 = vmatpush.xpose.msra.mxu0 0.0
        %764 = vmatpush.xpose.msra.mxu0 0.0
        %765 = vmatpush.xpose.msra.mxu0 0.0
        %766 = vmatpush.xpose.msra.mxu0 0.0
        %767 = vmatpush.xpose.msra.mxu0 0.0
        %768 = vmatpush.xpose.msra.mxu0 0.0
        %769 = vmatpush.xpose.msra.mxu0 0.0
        %770 = vmatpush.xpose.msra.mxu0 0.0
        %771 = vmatpush.xpose.msra.mxu0 0.0
        %772 = vmatpush.xpose.msra.mxu0 0.0
        %773 = vmatpush.xpose.msra.mxu0 0.0
        %774 = vmatpush.xpose.msra.mxu0 0.0
        %775 = vmatpush.xpose.msra.mxu0 0.0
        %776 = vmatpush.xpose.msra.mxu0 0.0
        %777 = vmatpush.xpose.msra.mxu0 0.0
        %778 = vmatpush.xpose.msra.mxu0 %v761
        %779 = vmatmul.f32.gmra.mxu0 %v759
        %v780 = vpop.f32.mrf.mxu0
        %v781 = vadd.f32 0.0, %v780
        %782 = vdwg.mxu0
        %v783 = vsel %vm481, %v781, -1e+30
        %v784 = vsel %vm485, %v783, -inf
        %785 = vmax.xlane.f32.xlu0 %v784
        %v786 = vpop.xlane.xlu0 %785
        %v787 = vsub.f32 %v783, %v786
        %v788 = vmul.f32 %v787, 1.442695
        %v789 = vpow.pop %v788
        %v790 = vsel %vm485, %v789, 0.0
        %791 = vadd.xlane.f32.xlu0 %v790
        %v792 = vpop.xlane.xlu0 %791
        %v793 = vrcp.pop %v792
        %v794 = vmul.f32 %v789, %v793
        %795 = vrot.lane.b32.xlu0 %v475, 40
        %v796 = vpop.permute.xlu0 %795
        %v799 = vsel %vm485, %v794, 0
        %801 = vmatpush.msra.mxu0 0.0
        %802 = vmatpush.msra.mxu0 0.0
        %803 = vmatpush.msra.mxu0 0.0
        %804 = vmatpush.msra.mxu0 0.0
        %805 = vmatpush.msra.mxu0 0.0
        %806 = vmatpush.msra.mxu0 0.0
        %807 = vmatpush.msra.mxu0 0.0
        %808 = vmatpush.msra.mxu0 0.0
        %809 = vmatpush.msra.mxu0 0.0
        %810 = vmatpush.msra.mxu0 0.0
        %811 = vmatpush.msra.mxu0 0.0
        %812 = vmatpush.msra.mxu0 0.0
        %813 = vmatpush.msra.mxu0 0.0
        %814 = vmatpush.msra.mxu0 0.0
        %815 = vmatpush.msra.mxu0 0.0
        %816 = vmatpush.msra.mxu0 %v796
        %817 = vmatmul.f32.gmra.mxu0 %v799
        %v818 = vpop.f32.mrf.mxu0
        %v819 = vadd.f32 0.0, %v818
        %820 = vdwg.mxu0
        %s821 = scalar_lea.vmem %s4, 24
        %v822 = vld [vmem:[%s821] sm:$0xff]
        %v824 = vsel %vm485, %v819, 0
        %826 = vmatpush.msra.mxu0 0.0
        %827 = vmatpush.msra.mxu0 0.0
        %828 = vmatpush.msra.mxu0 0.0
        %829 = vmatpush.msra.mxu0 0.0
        %830 = vmatpush.msra.mxu0 0.0
        %831 = vmatpush.msra.mxu0 0.0
        %832 = vmatpush.msra.mxu0 0.0
        %833 = vmatpush.msra.mxu0 0.0
        %834 = vmatpush.msra.mxu0 0.0
        %835 = vmatpush.msra.mxu0 0.0
        %836 = vmatpush.msra.mxu0 0.0
        %837 = vmatpush.msra.mxu0 0.0
        %838 = vmatpush.msra.mxu0 0.0
        %839 = vmatpush.msra.mxu0 0.0
        %840 = vmatpush.msra.mxu0 0.0
        %841 = vmatpush.msra.mxu0 %v822
        %842 = vmatmul.f32.gmra.mxu0 %v824
        %v843 = vpop.f32.mrf.mxu0
        %v844 = vadd.f32 0.0, %v843
        %845 = vdwg.mxu0
        %v846 = vadd.f32 %v754, %v844
        %v847 = vadd.f32 %v409, %v846
        %v848 = vld [vmem:[%s5] sm:$0x1]
        %v850 = vperm.slane %v848, 0
        %v852 = vadd.f32 %v847, %v850
        %v853 = vld [vmem:[%s6] sm:$0x1]
        %v854 = vld [vmem:[%s7] sm:$0x1]
        %v855 = vsel %vm412, %v852, 0.0
        %856 = vadd.xlane.f32.xlu0 %v855
        %v857 = vpop.xlane.xlu0 %856
        %v858 = vmul.f32 %v857, %v422
        %v859 = vsub.f32 %v852, %v858
        %v860 = vmul.f32 %v859, %v859
        %v861 = vsel %vm412, %v860, 0.0
        %862 = vadd.xlane.f32.xlu0 %v861
        %v863 = vpop.xlane.xlu0 %862
        %v864 = vmul.f32 %v863, %v422
        %v865 = vadd.f32 %v864, 1e-05
        %v866 = vrsqrt.pop %v865
        %v867 = vmul.f32 %v866, %v865
        %v868 = vmul.f32 %v867, %v866
        %v869 = vmul.f32 0.5, %v868
        %v870 = vsub.f32 1.5, %v869
        %v871 = vmul.f32 %v866, %v870
        %vm872 = vweird.f32 %v865
        %vm873 = vweird.f32 %v866
        %vm874 = vmor %vm872, %vm873
        %v875 = vsel %vm874, %v866, %v871
        %v876 = vmul.f32 %v859, %v875
        %v878 = vperm.slane %v853, 0
        %v880 = vmul.f32 %v876, %v878
        %v882 = vperm.slane %v854, 0
        %v884 = vadd.f32 %v880, %v882
        %v885 = vld [vmem:[%s8] sm:$0xff]
        %v886 = vld [vmem:[%s8 + $0x8] sm:$0xff]
        %v887 = vld [vmem:[%s8 + $0x10] sm:$0xff]
        %v888 = vld [vmem:[%s8 + $0x18] sm:$0xff]
        %v889 = vld [vmem:[%s9] sm:$0x1]
        %v891 = vperm.slane %v889, 0
        %v894 = vsel %vm412, %v884, 0
        %896 = vmatpush.msra.mxu0 0.0
        %897 = vmatpush.msra.mxu0 0.0
        %898 = vmatpush.msra.mxu0 0.0
        %899 = vmatpush.msra.mxu0 0.0
        %900 = vmatpush.msra.mxu0 0.0
        %901 = vmatpush.msra.mxu0 0.0
        %902 = vmatpush.msra.mxu0 0.0
        %903 = vmatpush.msra.mxu0 0.0
        %904 = vmatpush.msra.mxu0 0.0
        %905 = vmatpush.msra.mxu0 0.0
        %906 = vmatpush.msra.mxu0 0.0
        %907 = vmatpush.msra.mxu0 0.0
        %908 = vmatpush.msra.mxu0 %v888
        %909 = vmatpush.msra.mxu0 %v887
        %910 = vmatpush.msra.mxu0 %v886
        %911 = vmatpush.msra.mxu0 %v885
        %912 = vmatmul.f32.gmra.mxu0 %v894
        %v913 = vpop.f32.mrf.mxu0
        %v914 = vadd.f32 %v891, %v913
        %915 = vdwg.mxu0
        %v916 = vmax.f32 %v914, 0.0
        %v917 = vld [vmem:[%s10] sm:$0xff]
        %v918 = vld [vmem:[%s10 + $0x8] sm:$0xff]
        %v919 = vld [vmem:[%s10 + $0x10] sm:$0xff]
        %v920 = vld [vmem:[%s10 + $0x18] sm:$0xff]
        %v921 = vld [vmem:[%s10 + $0x20] sm:$0xff]
        %v922 = vld [vmem:[%s10 + $0x28] sm:$0xff]
        %v923 = vld [vmem:[%s10 + $0x30] sm:$0xff]
        %v924 = vld [vmem:[%s10 + $0x38] sm:$0xff]
        %v925 = vld [vmem:[%s10 + $0x40] sm:$0xff]
        %v926 = vld [vmem:[%s10 + $0x48] sm:$0xff]
        %v927 = vld [vmem:[%s10 + $0x50] sm:$0xff]
        %v928 = vld [vmem:[%s10 + $0x58] sm:$0xff]
        %v929 = vld [vmem:[%s10 + $0x60] sm:$0xff]
        %v930 = vld [vmem:[%s10 + $0x68] sm:$0xff]
        %v931 = vld [vmem:[%s10 + $0x70] sm:$0xff]
        %v932 = vld [vmem:[%s10 + $0x78] sm:$0xff]
        %v933 = vld [vmem:[%s11] sm:$0x1]
        %v935 = vperm.slane %v933, 0
        %937 = vmatpush.msra.mxu0 %v932
        %938 = vmatpush.msra.mxu0 %v931
        %939 = vmatpush.msra.mxu0 %v930
        %940 = vmatpush.msra.mxu0 %v929
        %941 = vmatpush.msra.mxu0 %v928
        %942 = vmatpush.msra.mxu0 %v927
        %943 = vmatpush.msra.mxu0 %v926
        %944 = vmatpush.msra.mxu0 %v925
        %945 = vmatpush.msra.mxu0 %v924
        %946 = vmatpush.msra.mxu0 %v923
        %947 = vmatpush.msra.mxu0 %v922
        %948 = vmatpush.msra.mxu0 %v921
        %949 = vmatpush.msra.mxu0 %v920
        %950 = vmatpush.msra.mxu0 %v919
        %951 = vmatpush.msra.mxu0 %v918
        %952 = vmatpush.msra.mxu0 %v917
        %953 = vmatmul.f32.gmra.mxu0 %v916
        %v954 = vpop.f32.mrf.mxu0
        %v955 = vadd.f32 %v935, %v954
        %956 = vdwg.mxu0
        %v957 = vadd.f32 %v852, %v955
        %958 = vst.msk [vmem:[%s404] sm:$0xff] %vm412, %v957
        %s959 = sand.u32 %s291, 1
        %s960 = scalar_lea.sflag [#allocation3], %s959
        %s961 = sand.u32 %s291, 1
        %s962 = smul.addr %s961, 8
        %s963 = scalar_lea.vmem [#allocation2], %s962
        // Predicated region
        $region69: #{tpu_custom_call.1} parent=67 // pred_check
          %p964 = pneg %p301
        $region70: #{tpu_custom_call.1} parent=67 // pred_check_branch
          %966 = sbr.rel (%p964) target = $region72
        $region71: #{tpu_custom_call.1} parent=67 // pred_region
          %968 = vsyncadd %s960, 0
          %s969 = smul.addr %s26, 8
          %s970 = scalar_lea.hbm %s12, %s969
          %s972 = sshll.u32 %s963, 4
          %s973 = int_to_ptr.vmem [resolvable:$true] %s972
          %s974 = sshll.u32 %s970, 4
          %s975 = int_to_ptr.hbm [resolvable:$true] %s974
          %977 = dma.vmem_to_hbm [thread:$0]  %s973, 128, %s975, %s960
        $region72: #{tpu_custom_call.1} parent=67 // pred_fallthru
          _
      $region68: #{tpu_custom_call.1} parent=5 // pred_fallthru
        _
      %p978 = scmp.le.s32.totalorder 2, %s21
      // Predicated region
      $region73: #{tpu_custom_call.1} parent=5 // pred_check
        %p979 = pneg %p978
      $region74: #{tpu_custom_call.1} parent=5 // pred_check_branch
        %981 = sbr.rel (%p979) target = $region76
      $region75: #{tpu_custom_call.1} parent=5 // pred_region
        %s982 = ssub.s32 %s21, 2
        // Predicated region
        $region77: #{tpu_custom_call.1} parent=75 // pred_check
          %p983 = pneg %p307
        $region78: #{tpu_custom_call.1} parent=75 // pred_check_branch
          %985 = sbr.rel (%p983) target = $region80
        $region79: #{tpu_custom_call.1} parent=75 // pred_region
          %s986 = sand.u32 %s292, 1
          %s987 = scalar_lea.sflag [#allocation3], %s986
          %s988 = sand.u32 %s292, 1
          %s989 = smul.addr %s988, 8
          %s990 = scalar_lea.vmem [#allocation2], %s989
          %992 = dma.done %s987, 128
        $region80: #{tpu_custom_call.1} parent=75 // pred_fallthru
          _
      $region76: #{tpu_custom_call.1} parent=5 // pred_fallthru
        _
    $region6: #{tpu_custom_call.1} parent=1 // loop_footer
      %s25 = sadd.s32 1, %s21
    $region7: #{tpu_custom_call.1} parent=1 // loop_footer_branch
      %20 = sbr.rel target = $region3
    $region8: #{tpu_custom_call.1} parent=1 // loop_exit
      _
    %993 = vsyncpa [#allocation3], 1
    %s994 = scalar_lea.sflag [#allocation3], 1
    %995 = vsyncpa %s994, 1

</llo_original>
